<compile_context>
chip_gen: v7x
topology: tpu7x:2x2x1
jax: 0.10.0
libtpu: 0.0.40
codegen_flags: <defaults>
</compile_context>

<pallas_src>
import functools

import jax
import jax.numpy as jnp
from jax.experimental import pallas as pl
from jax.experimental.pallas import tpu as pltpu


def _pair(x):
    if isinstance(x, (tuple, list)):
        return tuple(x)
    return (x, x)


def _same_pads(kernel_size, dilation):
    """SameConv2d._reversed_padding_repeated_twice semantics -> ((hl,hr),(wl,wr))."""
    ks = _pair(kernel_size)
    dl = _pair(dilation)
    pads = []
    for d, k in zip(dl, ks):
        total = d * (k - 1)
        left = total // 2
        pads.append((left, total - left))
    return tuple(pads)


def _round_up(x, m):
    return (x + m - 1) // m * m


def _step_vmem_bytes(nb, *, c_in, c_pad, c_out, hw, lp, kh, kw, use_accum):
    """Rough per-grid-step VMEM footprint used to size the image batch Nb."""
    bf2, f4 = 2, 4
    total = 2 * nb * c_in * hw * bf2            # double-buffered input blocks
    total += 2 * nb * c_out * hw * f4           # double-buffered output blocks
    total += nb * c_pad * lp * bf2              # flat zero-extended staging scratch
    total += c_out * kh * kw * c_pad * bf2      # weights (single copy)
    total += kw * nb * hw * bf2 + c_out * f4    # column masks + bias
    if use_accum:
        total += c_out * nb * hw * f4           # f32 accumulator scratch
        total += c_pad * nb * hw * bf2          # one live tap patch
    else:
        total += kh * kw * c_pad * nb * hw * bf2  # materialized im2col RHS
        total += c_out * nb * hw * f4             # matmul result
    return total


def _choose_images_per_step(n, budget, **sizes):
    """Largest divisor of n (<=8) that fits the VMEM budget; prefer >=2 grid
    steps with an even split so both v7x TensorCores are fed."""
    divisors = [d for d in range(1, min(n, 8) + 1) if n % d == 0]
    fits = [d for d in divisors if _step_vmem_bytes(d, **sizes) <= budget] or [1]
    even = [d for d in fits if (n // d) % 2 == 0]
    return max(even if even else fits)


def _conv_kernel(x_ref, w_ref, b_ref, m_ref, o_ref, *scratch, KH, KW, H, W,
                 dh, dw, ph_l, pw_l, Cs, Cin_p, Nb, A0, use_accum):
    """One grid step == Nb images.

    x_ref : (Nb, Cs, HW)          bf16  flat channel-first images.
    w_ref : (Cout, KH*KW*Cin_p)   bf16  [fused path]  rows ordered (kh,kw,cin)
            (KH*KW, Cout, Cin_p)  bf16  [accum path]
    b_ref : (Cout, 1)             f32
    m_ref : (KW, Nb*HW)           bf16  per-kw column-validity mask.
    o_ref : (Nb, Cout, HW)        f32   H*W on the 128-lane axis.
    scratch[0] : (Nb, Cin_p, Lp)  bf16  flat zero-extended staging buffer.
    scratch[1] : (Cout, Nb*HW)    f32   accumulator (accum path only).
    """
    HW = H * W
    xpad_ref = scratch[0]
    Lp = xpad_ref.shape[2]

    # --- stage this step's images into the flat zero-extended buffer --------
    # Pad regions are refreshed every step (tiny stores) so correctness does
    # not depend on program_id==0, which never fires on v7x's second core.
    if A0 > 0:
        xpad_ref[:, :, 0:A0] = jnp.zeros((Nb, Cin_p, A0), jnp.bfloat16)
    if Lp - A0 - HW > 0:
        xpad_ref[:, :, A0 + HW:Lp] = jnp.zeros(
            (Nb, Cin_p, Lp - A0 - HW), jnp.bfloat16)
    if Cin_p > Cs:
        # Zero the padded channel rows (overwritten data rows are harmless;
        # this branch only triggers for small Cin).
        xpad_ref[:, :, A0:A0 + HW] = jnp.zeros((Nb, Cin_p, HW), jnp.bfloat16)
    xpad_ref[:, 0:Cs, A0:A0 + HW] = x_ref[...]     # lane-aligned (A0 % 128 == 0)

    def tap_patch(kh, kw):
        # Every conv tap is a contiguous static lane-slice of the flat buffer;
        # out-of-image rows land in the zero extension, and reads that wrapped
        # across a row edge are zeroed by the bf16 per-kw column mask.
        start = A0 + (kh * dh - ph_l) * W + (kw * dw - pw_l)
        cols = [xpad_ref[b, :, start:start + HW] for b in range(Nb)]
        patch = cols[0] if Nb == 1 else jnp.concatenate(cols, axis=1)
        if kw * dw != pw_l:                        # mask not all-ones
            patch = patch * m_ref[kw:kw + 1, :]
        return patch                               # (Cin_p, Nb*HW) bf16

    if use_accum:
        # Per-tap accumulation into a f32 VMEM scratch: the (KH*KW*Cin_p,Nb*HW)
        # im2col buffer never materializes (live VMEM stays O(Cin_p*Nb*HW)).
        acc_ref = scratch[1]
        acc_ref[...] = jnp.zeros_like(acc_ref)
        for kh in range(KH):
            for kw in range(KW):
                acc_ref[...] += jnp.dot(w_ref[kh * KW + kw], tap_patch(kh, kw),
                                        preferred_element_type=jnp.float32)
        acc = acc_ref[...] + b_ref[...]
    else:
        # Tiny Cin: one weight-stationary MXU matmul over all taps and images.
        rhs = jnp.concatenate(
            [tap_patch(kh, kw) for kh in range(KH) for kw in range(KW)], axis=0)
        acc = jnp.dot(w_ref[...], rhs, preferred_element_type=jnp.float32)
        acc = acc + b_ref[...]

    for b in range(Nb):                            # lane-dense per-image stores
        o_ref[b] = acc[:, b * HW:(b + 1) * HW].astype(o_ref.dtype)


def same_conv2d(imgs_nchw, weight_oihw, bias, *, stride=1, dilation=1,
                tap_accumulate=None, vmem_budget_bytes=20 * 1024 * 1024):
    """Forward pass of SameConv2d (manual 'same' padding + dense Conv2d).

    imgs_nchw   : (N, Cin, H, W) float32
    weight_oihw : (Cout, Cin, KH, KW)
    bias        : (Cout,)
    returns     : (N, Cout, Ho, Wo)  (Ho == H, Wo == W for stride=1)
    """
    N, Cin, H, W = imgs_nchw.shape
    Cout, _, KH, KW = weight_oihw.shape
    sh, sw = _pair(stride)
    dh, dw = _pair(dilation)
    (ph_l, ph_r), (pw_l, pw_r) = _same_pads((KH, KW), (dh, dw))

    HW = H * W
    A = ph_l * W + pw_l                      # required front zero extension
    B = ph_r * W + pw_r                      # required back zero extension
    A0 = _round_up(A, 128)                   # lane-aligned staging offset
    Lp = A0 + HW + B
    Cs = _round_up(Cin, 2)                   # even channel count (bf16 packing)
    Cin_p = _round_up(Cin, 16)               # bf16 sublane-tile aligned channels

    if tap_accumulate is None:
        use_accum = Cin_p * KH * KW >= 512   # big-Cin path
    else:
        use_accum = bool(tap_accumulate)

    Nb = _choose_images_per_step(
        N, vmem_budget_bytes, c_in=Cs, c_pad=Cin_p, c_out=Cout, hw=HW, lp=Lp,
        kh=KH, kw=KW, use_accum=use_accum)
    G = N // Nb

    # ---- tiny layout-preserving glue: reshape + bf16 cast only -------------
    x_flat = imgs_nchw.astype(jnp.bfloat16).reshape(N, Cin, HW)
    if Cs > Cin:
        x_flat = jnp.pad(x_flat, ((0, 0), (0, Cs - Cin), (0, 0)))

    if use_accum:
        w_k = jnp.transpose(weight_oihw, (2, 3, 0, 1))            # (KH,KW,Cout,Cin)
        w_k = jnp.pad(w_k, ((0, 0), (0, 0), (0, 0), (0, Cin_p - Cin)))
        w_k = w_k.reshape(KH * KW, Cout, Cin_p).astype(jnp.bfloat16)
        w_shape, w_map = (KH * KW, Cout, Cin_p), (lambda n: (0, 0, 0))
    else:
        w_k = jnp.transpose(weight_oihw, (0, 2, 3, 1))            # (Cout,KH,KW,Cin)
        w_k = jnp.pad(w_k, ((0, 0), (0, 0), (0, 0), (0, Cin_p - Cin)))
        w_k = w_k.reshape(Cout, KH * KW * Cin_p).astype(jnp.bfloat16)
        w_shape, w_map = (Cout, KH * KW * Cin_p), (lambda n: (0, 0))

    b2d = bias.reshape(Cout, 1).astype(jnp.float32)

    # Per-kw column-validity mask ('same' padding along W), tiled over the Nb
    # images that share the lane axis.  bf16 so the mask multiply stays packed.
    col = jnp.arange(HW, dtype=jnp.int32) % W
    colmask = jnp.stack(
        [((col + (kw * dw - pw_l)) >= 0) & ((col + (kw * dw - pw_l)) < W)
         for kw in range(KW)], axis=0).astype(jnp.bfloat16)       # (KW, HW)
    colmask = jnp.tile(colmask, (1, Nb))                           # (KW, Nb*HW)

    kernel = functools.partial(
        _conv_kernel, KH=KH, KW=KW, H=H, W=W, dh=dh, dw=dw, ph_l=ph_l,
        pw_l=pw_l, Cs=Cs, Cin_p=Cin_p, Nb=Nb, A0=A0, use_accum=use_accum)

    scratch_shapes = [pltpu.VMEM((Nb, Cin_p, Lp), jnp.bfloat16)]
    if use_accum:
        scratch_shapes.append(pltpu.VMEM((Cout, Nb * HW), jnp.float32))

    # TODO(synk): for very large H*W, tile H with a (KH-1)*dh-row halo via the
    # index_map so blocks stay well inside v7x's 64 MiB VMEM.
    def build_call(single_buffer_consts):
        def const_spec(shape, index_map):
            # Grid-invariant operands: double-buffering buys nothing, keep one
            # VMEM copy when this jax version supports pipeline_mode.
            if single_buffer_consts:
                return pl.BlockSpec(shape, index_map,
                                    pipeline_mode=pl.Buffered(1))
            return pl.BlockSpec(shape, index_map)

        return pl.pallas_call(
            kernel,
            out_shape=jax.ShapeDtypeStruct((N, Cout, HW), jnp.float32),
            grid_spec=pltpu.PrefetchScalarGridSpec(
                num_scalar_prefetch=0,
                grid=(G,),
                in_specs=[
                    pl.BlockSpec((Nb, Cs, HW), lambda n: (n, 0, 0)),
                    const_spec(w_shape, w_map),
                    const_spec((Cout, 1), lambda n: (0, 0)),
                    const_spec((KW, Nb * HW), lambda n: (0, 0)),
                ],
                out_specs=pl.BlockSpec((Nb, Cout, HW), lambda n: (n, 0, 0)),
                scratch_shapes=scratch_shapes,
            ),
            compiler_params=pltpu.CompilerParams(
                dimension_semantics=("parallel",),
                vmem_limit_bytes=40 * 1024 * 1024,
            ),
        )

    try:
        out_flat = build_call(True)(x_flat, w_k, b2d, colmask)
    except Exception:
        # Fallback for jax versions without BlockSpec pipeline_mode/Buffered.
        out_flat = build_call(False)(x_flat, w_k, b2d, colmask)

    out = out_flat.reshape(N, Cout, H, W)    # free contiguous reshape to NCHW
    if sh != 1 or sw != 1:
        # TODO(synk): for stride > 1, skip non-output rows in the grid and
        # subsample W lanes before the store instead of slicing the full
        # stride-1 output here (sh*sw x extra work today).
        out = out[:, :, ::sh, ::sw]
    return out


def _reference(imgs, weight, bias, *, stride=1, dilation=1):
    """Pure-JAX reference (lax conv) with matching bf16-quantized operands."""
    KH, KW = weight.shape[2], weight.shape[3]
    sh, sw = _pair(stride)
    dh, dw = _pair(dilation)
    pads = _same_pads((KH, KW), (dh, dw))
    # TODO(synk): the kernel uses bf16 MXU operands with f32 accumulation; an
    # f32 / 3-pass-bf16 path would be needed for bit-parity with f32 PyTorch.
    imgs_q = imgs.astype(jnp.bfloat16).astype(jnp.float32)
    w_q = weight.astype(jnp.bfloat16).astype(jnp.float32)
    out = jax.lax.conv_general_dilated(
        imgs_q, w_q,
        window_strides=(sh, sw),
        padding=pads,
        rhs_dilation=(dh, dw),
        dimension_numbers=("NCHW", "OIHW", "NCHW"),
        precision=jax.lax.Precision.HIGHEST,
    )
    return out + bias.reshape(1, -1, 1, 1)


if __name__ == "__main__":
    root = jax.random.PRNGKey(0)

    def run_case(idx, N, Cin, Cout, H, W, K, *, stride=1, dilation=1,
                 tap_accumulate=None):
        kx, kw_, kb = jax.random.split(jax.random.fold_in(root, idx), 3)
        x = jax.random.normal(kx, (N, Cin, H, W), dtype=jnp.float32)
        fan_in = Cin * K * K
        bound = 1.0 / (fan_in ** 0.5)   # nn.Conv2d default init range
        weight = jax.random.uniform(kw_, (Cout, Cin, K, K), jnp.float32,
                                    -bound, bound)
        b = jax.random.uniform(kb, (Cout,), jnp.float32, -bound, bound)

        out = same_conv2d(x, weight, b, stride=stride, dilation=dilation,
                          tap_accumulate=tap_accumulate)
        out = jax.block_until_ready(out)

        ref = _reference(x, weight, b, stride=stride, dilation=dilation)
        assert out.shape == ref.shape, (out.shape, ref.shape)
        err = float(jnp.max(jnp.abs(out - ref)))
        assert jnp.allclose(out, ref, atol=2e-3, rtol=2e-3), err

    # Primary spec config: SameConv2d(4, 8, kernel_size=3) on (2, 4, 16, 16).
    run_case(0, 2, 4, 8, 16, 16, 3)
    # Manual-'same'-pad + strided conv (allowed by this module, unlike
    # padding='same' in stock Conv2d).
    run_case(1, 2, 4, 8, 16, 16, 3, stride=2)
    # Per-tap f32-accumulation path + multi-image grid steps + dilation.
    run_case(2, 8, 4, 8, 8, 8, 3, dilation=2, tap_accumulate=True)
    # Fused-im2col path with multiple images per grid step.
    run_case(3, 8, 4, 8, 8, 8, 3)

    print("KERNEL_OK")
</pallas_src>

<mosaic_0001>
module attributes {stable_mosaic.version = 11 : i64} {
  func.func @_conv_kernel(%arg0: i32, %arg1: memref<1x4x256xbf16, #tpu.memory_space<vmem>>, %arg2: memref<8x144xbf16, #tpu.memory_space<vmem>>, %arg3: memref<8x1xf32, #tpu.memory_space<vmem>>, %arg4: memref<3x256xbf16, #tpu.memory_space<vmem>>, %arg5: memref<1x8x256xf32, #tpu.memory_space<vmem>>, %arg6: memref<1x16x401xbf16, #tpu.memory_space<vmem>>) attributes {dimension_semantics = [#tpu.dimension_semantics<parallel>], iteration_bounds = array<i64: 2>, scalar_prefetch = 0 : i64, scratch_operands = 1 : i64, tpu.core_type = #tpu.core_type<tc>, window_params = [{transform_indices = @transform_0, window_bounds = array<i64: 1, 4, 256>}, {pipeline_mode = #tpu.pipeline_mode<synchronous>, transform_indices = @transform_1, window_bounds = array<i64: 8, 144>}, {pipeline_mode = #tpu.pipeline_mode<synchronous>, transform_indices = @transform_2, window_bounds = array<i64: 8, 1>}, {pipeline_mode = #tpu.pipeline_mode<synchronous>, transform_indices = @transform_3, window_bounds = array<i64: 3, 256>}, {transform_indices = @transform_4, window_bounds = array<i64: 1, 8, 256>}]} {
    %cst = arith.constant 0.000000e+00 : bf16
    %0 = vector.broadcast %cst : bf16 to vector<1x16x128xbf16>
    %c0 = arith.constant 0 : index
    %c0_0 = arith.constant 0 : index
    %c0_1 = arith.constant 0 : index
    %1 = vector.load %arg6[%c0, %c0_0, %c0_1] : memref<1x16x401xbf16, #tpu.memory_space<vmem>>, vector<1x16x128xbf16>
    tpu.vector_store %arg6[%c0, %c0_0, %c0_1], %0 {strides = array<i32>} : memref<1x16x401xbf16, #tpu.memory_space<vmem>>, vector<1x16x128xbf16>,
    %cst_2 = arith.constant 0.000000e+00 : bf16
    %2 = vector.broadcast %cst_2 : bf16 to vector<1x16x17xbf16>
    %c0_3 = arith.constant 0 : index
    %c0_4 = arith.constant 0 : index
    %c384 = arith.constant 384 : index
    %3 = vector.load %arg6[%c0_3, %c0_4, %c384] : memref<1x16x401xbf16, #tpu.memory_space<vmem>>, vector<1x16x17xbf16>
    tpu.vector_store %arg6[%c0_3, %c0_4, %c384], %2 {strides = array<i32>} : memref<1x16x401xbf16, #tpu.memory_space<vmem>>, vector<1x16x17xbf16>,
    %cst_5 = arith.constant 0.000000e+00 : bf16
    %4 = vector.broadcast %cst_5 : bf16 to vector<1x16x256xbf16>
    %c0_6 = arith.constant 0 : index
    %c0_7 = arith.constant 0 : index
    %c128 = arith.constant 128 : index
    %5 = vector.load %arg6[%c0_6, %c0_7, %c128] : memref<1x16x401xbf16, #tpu.memory_space<vmem>>, vector<1x16x256xbf16>
    tpu.vector_store %arg6[%c0_6, %c0_7, %c128], %4 {strides = array<i32>} : memref<1x16x401xbf16, #tpu.memory_space<vmem>>, vector<1x16x256xbf16>,
    %c0_8 = arith.constant 0 : index
    %c0_9 = arith.constant 0 : index
    %c0_10 = arith.constant 0 : index
    %6 = vector.load %arg1[%c0_8, %c0_9, %c0_10] : memref<1x4x256xbf16, #tpu.memory_space<vmem>>, vector<1x4x256xbf16>
    %c0_11 = arith.constant 0 : index
    %c0_12 = arith.constant 0 : index
    %c128_13 = arith.constant 128 : index
    %7 = vector.load %arg6[%c0_11, %c0_12, %c128_13] : memref<1x16x401xbf16, #tpu.memory_space<vmem>>, vector<1x4x256xbf16>
    tpu.vector_store %arg6[%c0_11, %c0_12, %c128_13], %6 {strides = array<i32>} : memref<1x16x401xbf16, #tpu.memory_space<vmem>>, vector<1x4x256xbf16>,
    %c0_14 = arith.constant 0 : index
    %c0_15 = arith.constant 0 : index
    %c111 = arith.constant 111 : index
    %8 = vector.load %arg6[%c0_14, %c0_15, %c111] : memref<1x16x401xbf16, #tpu.memory_space<vmem>>, vector<1x16x256xbf16>
    %9 = vector.shape_cast %8 : vector<1x16x256xbf16> to vector<16x256xbf16>
    %c0_16 = arith.constant 0 : index
    %c0_17 = arith.constant 0 : index
    %10 = vector.load %arg4[%c0_16, %c0_17] : memref<3x256xbf16, #tpu.memory_space<vmem>>, vector<1x256xbf16>
    %11 = vector.broadcast %10 : vector<1x256xbf16> to vector<16x256xbf16>
    %12 = arith.mulf %9, %11 : vector<16x256xbf16>
    %c0_18 = arith.constant 0 : index
    %c0_19 = arith.constant 0 : index
    %c112 = arith.constant 112 : index
    %13 = vector.load %arg6[%c0_18, %c0_19, %c112] : memref<1x16x401xbf16, #tpu.memory_space<vmem>>, vector<1x16x256xbf16>
    %14 = vector.shape_cast %13 : vector<1x16x256xbf16> to vector<16x256xbf16>
    %c0_20 = arith.constant 0 : index
    %c0_21 = arith.constant 0 : index
    %c113 = arith.constant 113 : index
    %15 = vector.load %arg6[%c0_20, %c0_21, %c113] : memref<1x16x401xbf16, #tpu.memory_space<vmem>>, vector<1x16x256xbf16>
    %16 = vector.shape_cast %15 : vector<1x16x256xbf16> to vector<16x256xbf16>
    %c2 = arith.constant 2 : index
    %c0_22 = arith.constant 0 : index
    %17 = vector.load %arg4[%c2, %c0_22] : memref<3x256xbf16, #tpu.memory_space<vmem>>, vector<1x256xbf16>
    %18 = vector.broadcast %17 : vector<1x256xbf16> to vector<16x256xbf16>
    %19 = arith.mulf %16, %18 : vector<16x256xbf16>
    %c0_23 = arith.constant 0 : index
    %c0_24 = arith.constant 0 : index
    %c127 = arith.constant 127 : index
    %20 = vector.load %arg6[%c0_23, %c0_24, %c127] : memref<1x16x401xbf16, #tpu.memory_space<vmem>>, vector<1x16x256xbf16>
    %21 = vector.shape_cast %20 : vector<1x16x256xbf16> to vector<16x256xbf16>
    %c0_25 = arith.constant 0 : index
    %c0_26 = arith.constant 0 : index
    %22 = vector.load %arg4[%c0_25, %c0_26] : memref<3x256xbf16, #tpu.memory_space<vmem>>, vector<1x256xbf16>
    %23 = vector.broadcast %22 : vector<1x256xbf16> to vector<16x256xbf16>
    %24 = arith.mulf %21, %23 : vector<16x256xbf16>
    %c0_27 = arith.constant 0 : index
    %c0_28 = arith.constant 0 : index
    %c128_29 = arith.constant 128 : index
    %25 = vector.load %arg6[%c0_27, %c0_28, %c128_29] : memref<1x16x401xbf16, #tpu.memory_space<vmem>>, vector<1x16x256xbf16>
    %26 = vector.shape_cast %25 : vector<1x16x256xbf16> to vector<16x256xbf16>
    %c0_30 = arith.constant 0 : index
    %c0_31 = arith.constant 0 : index
    %c129 = arith.constant 129 : index
    %27 = vector.load %arg6[%c0_30, %c0_31, %c129] : memref<1x16x401xbf16, #tpu.memory_space<vmem>>, vector<1x16x256xbf16>
    %28 = vector.shape_cast %27 : vector<1x16x256xbf16> to vector<16x256xbf16>
    %c2_32 = arith.constant 2 : index
    %c0_33 = arith.constant 0 : index
    %29 = vector.load %arg4[%c2_32, %c0_33] : memref<3x256xbf16, #tpu.memory_space<vmem>>, vector<1x256xbf16>
    %30 = vector.broadcast %29 : vector<1x256xbf16> to vector<16x256xbf16>
    %31 = arith.mulf %28, %30 : vector<16x256xbf16>
    %c0_34 = arith.constant 0 : index
    %c0_35 = arith.constant 0 : index
    %c143 = arith.constant 143 : index
    %32 = vector.load %arg6[%c0_34, %c0_35, %c143] : memref<1x16x401xbf16, #tpu.memory_space<vmem>>, vector<1x16x256xbf16>
    %33 = vector.shape_cast %32 : vector<1x16x256xbf16> to vector<16x256xbf16>
    %c0_36 = arith.constant 0 : index
    %c0_37 = arith.constant 0 : index
    %34 = vector.load %arg4[%c0_36, %c0_37] : memref<3x256xbf16, #tpu.memory_space<vmem>>, vector<1x256xbf16>
    %35 = vector.broadcast %34 : vector<1x256xbf16> to vector<16x256xbf16>
    %36 = arith.mulf %33, %35 : vector<16x256xbf16>
    %c0_38 = arith.constant 0 : index
    %c0_39 = arith.constant 0 : index
    %c144 = arith.constant 144 : index
    %37 = vector.load %arg6[%c0_38, %c0_39, %c144] : memref<1x16x401xbf16, #tpu.memory_space<vmem>>, vector<1x16x256xbf16>
    %38 = vector.shape_cast %37 : vector<1x16x256xbf16> to vector<16x256xbf16>
    %c0_40 = arith.constant 0 : index
    %c0_41 = arith.constant 0 : index
    %c145 = arith.constant 145 : index
    %39 = vector.load %arg6[%c0_40, %c0_41, %c145] : memref<1x16x401xbf16, #tpu.memory_space<vmem>>, vector<1x16x256xbf16>
    %40 = vector.shape_cast %39 : vector<1x16x256xbf16> to vector<16x256xbf16>
    %c2_42 = arith.constant 2 : index
    %c0_43 = arith.constant 0 : index
    %41 = vector.load %arg4[%c2_42, %c0_43] : memref<3x256xbf16, #tpu.memory_space<vmem>>, vector<1x256xbf16>
    %42 = vector.broadcast %41 : vector<1x256xbf16> to vector<16x256xbf16>
    %43 = arith.mulf %40, %42 : vector<16x256xbf16>
    %44 = tpu.concatenate %12, %14, %19, %24, %26, %31, %36, %38, %43 in 0 : vector<16x256xbf16>, vector<16x256xbf16>, vector<16x256xbf16>, vector<16x256xbf16>, vector<16x256xbf16>, vector<16x256xbf16>, vector<16x256xbf16>, vector<16x256xbf16>, vector<16x256xbf16> -> vector<144x256xbf16>
    %c0_44 = arith.constant 0 : index
    %c0_45 = arith.constant 0 : index
    %45 = vector.load %arg2[%c0_44, %c0_45] : memref<8x144xbf16, #tpu.memory_space<vmem>>, vector<8x144xbf16>
    %cst_46 = arith.constant dense<0.000000e+00> : vector<8x256xf32>
    %46 = tpu.matmul %45, %44, %cst_46 {dimension_numbers = #tpu.dot_dimension_numbers<[1], [0], [0], [1], [0, 0, 1, 1], [], []>} : vector<8x144xbf16>, vector<144x256xbf16>, vector<8x256xf32> -> vector<8x256xf32>
    %c0_47 = arith.constant 0 : index
    %c0_48 = arith.constant 0 : index
    %47 = vector.load %arg3[%c0_47, %c0_48] : memref<8x1xf32, #tpu.memory_space<vmem>>, vector<8x1xf32>
    %48 = vector.broadcast %47 : vector<8x1xf32> to vector<8x256xf32>
    %49 = arith.addf %46, %48 : vector<8x256xf32>
    %c0_49 = arith.constant 0 : index
    %c0_50 = arith.constant 0 : index
    %c0_51 = arith.constant 0 : index
    %50 = vector.load %arg5[%c0_49, %c0_50, %c0_51] : memref<1x8x256xf32, #tpu.memory_space<vmem>>, vector<1x8x256xf32>
    %51 = vector.shape_cast %50 : vector<1x8x256xf32> to vector<8x256xf32>
    %52 = vector.shape_cast %49 : vector<8x256xf32> to vector<1x8x256xf32>
    tpu.vector_store %arg5[%c0_49, %c0_50, %c0_51], %52 {strides = array<i32>} : memref<1x8x256xf32, #tpu.memory_space<vmem>>, vector<1x8x256xf32>,
    return
  }
  func.func @transform_0(%arg0: i32) -> (i32, i32, i32) {
    %c0_i32 = arith.constant 0 : i32
    %c0_i32_0 = arith.constant 0 : i32
    %c0_i32_1 = arith.constant 0 : i32
    return %arg0, %c0_i32, %c0_i32_0 : i32, i32, i32
  }
  func.func @transform_1(%arg0: i32) -> (i32, i32) {
    %c0_i32 = arith.constant 0 : i32
    %c0_i32_0 = arith.constant 0 : i32
    %c0_i32_1 = arith.constant 0 : i32
    return %c0_i32, %c0_i32_0 : i32, i32
  }
  func.func @transform_2(%arg0: i32) -> (i32, i32) {
    %c0_i32 = arith.constant 0 : i32
    %c0_i32_0 = arith.constant 0 : i32
    %c0_i32_1 = arith.constant 0 : i32
    return %c0_i32, %c0_i32_0 : i32, i32
  }
  func.func @transform_3(%arg0: i32) -> (i32, i32) {
    %c0_i32 = arith.constant 0 : i32
    %c0_i32_0 = arith.constant 0 : i32
    %c0_i32_1 = arith.constant 0 : i32
    return %c0_i32, %c0_i32_0 : i32, i32
  }
  func.func @transform_4(%arg0: i32) -> (i32, i32, i32) {
    %c0_i32 = arith.constant 0 : i32
    %c0_i32_0 = arith.constant 0 : i32
    %c0_i32_1 = arith.constant 0 : i32
    return %arg0, %c0_i32, %c0_i32_0 : i32, i32, i32
  }
}

module attributes {stable_mosaic.version = 11 : i64} {
  func.func @_conv_kernel(%arg0: i32, %arg1: memref<1x4x256xbf16, #tpu.memory_space<vmem>>, %arg2: memref<8x144xbf16, #tpu.memory_space<vmem>>, %arg3: memref<8x1xf32, #tpu.memory_space<vmem>>, %arg4: memref<3x256xbf16, #tpu.memory_space<vmem>>, %arg5: memref<1x8x256xf32, #tpu.memory_space<vmem>>, %arg6: memref<1x16x401xbf16, #tpu.memory_space<vmem>>) attributes {dimension_semantics = [#tpu.dimension_semantics<parallel>], iteration_bounds = array<i64: 2>, scalar_prefetch = 0 : i64, scratch_operands = 1 : i64, tpu.core_type = #tpu.core_type<tc>, window_params = [{transform_indices = @transform_0, window_bounds = array<i64: 1, 4, 256>}, {pipeline_mode = #tpu.pipeline_mode<synchronous>, transform_indices = @transform_1, window_bounds = array<i64: 8, 144>}, {pipeline_mode = #tpu.pipeline_mode<synchronous>, transform_indices = @transform_2, window_bounds = array<i64: 8, 1>}, {pipeline_mode = #tpu.pipeline_mode<synchronous>, transform_indices = @transform_3, window_bounds = array<i64: 3, 256>}, {transform_indices = @transform_4, window_bounds = array<i64: 1, 8, 256>}]} {
    %cst = arith.constant 0.000000e+00 : bf16
    %0 = vector.broadcast %cst : bf16 to vector<1x16x128xbf16>
    %c0 = arith.constant 0 : index
    %c0_0 = arith.constant 0 : index
    %c0_1 = arith.constant 0 : index
    %1 = vector.load %arg6[%c0, %c0_0, %c0_1] : memref<1x16x401xbf16, #tpu.memory_space<vmem>>, vector<1x16x128xbf16>
    tpu.vector_store %arg6[%c0, %c0_0, %c0_1], %0 {strides = array<i32>} : memref<1x16x401xbf16, #tpu.memory_space<vmem>>, vector<1x16x128xbf16>,
    %cst_2 = arith.constant 0.000000e+00 : bf16
    %2 = vector.broadcast %cst_2 : bf16 to vector<1x16x17xbf16>
    %c0_3 = arith.constant 0 : index
    %c0_4 = arith.constant 0 : index
    %c384 = arith.constant 384 : index
    %3 = vector.load %arg6[%c0_3, %c0_4, %c384] : memref<1x16x401xbf16, #tpu.memory_space<vmem>>, vector<1x16x17xbf16>
    tpu.vector_store %arg6[%c0_3, %c0_4, %c384], %2 {strides = array<i32>} : memref<1x16x401xbf16, #tpu.memory_space<vmem>>, vector<1x16x17xbf16>,
    %cst_5 = arith.constant 0.000000e+00 : bf16
    %4 = vector.broadcast %cst_5 : bf16 to vector<1x16x256xbf16>
    %c0_6 = arith.constant 0 : index
    %c0_7 = arith.constant 0 : index
    %c128 = arith.constant 128 : index
    %5 = vector.load %arg6[%c0_6, %c0_7, %c128] : memref<1x16x401xbf16, #tpu.memory_space<vmem>>, vector<1x16x256xbf16>
    tpu.vector_store %arg6[%c0_6, %c0_7, %c128], %4 {strides = array<i32>} : memref<1x16x401xbf16, #tpu.memory_space<vmem>>, vector<1x16x256xbf16>,
    %c0_8 = arith.constant 0 : index
    %c0_9 = arith.constant 0 : index
    %c0_10 = arith.constant 0 : index
    %6 = vector.load %arg1[%c0_8, %c0_9, %c0_10] : memref<1x4x256xbf16, #tpu.memory_space<vmem>>, vector<1x4x256xbf16>
    %c0_11 = arith.constant 0 : index
    %c0_12 = arith.constant 0 : index
    %c128_13 = arith.constant 128 : index
    %7 = vector.load %arg6[%c0_11, %c0_12, %c128_13] : memref<1x16x401xbf16, #tpu.memory_space<vmem>>, vector<1x4x256xbf16>
    tpu.vector_store %arg6[%c0_11, %c0_12, %c128_13], %6 {strides = array<i32>} : memref<1x16x401xbf16, #tpu.memory_space<vmem>>, vector<1x4x256xbf16>,
    %c0_14 = arith.constant 0 : index
    %c0_15 = arith.constant 0 : index
    %c111 = arith.constant 111 : index
    %8 = vector.load %arg6[%c0_14, %c0_15, %c111] : memref<1x16x401xbf16, #tpu.memory_space<vmem>>, vector<1x16x256xbf16>
    %9 = vector.shape_cast %8 : vector<1x16x256xbf16> to vector<16x256xbf16>
    %c0_16 = arith.constant 0 : index
    %c0_17 = arith.constant 0 : index
    %10 = vector.load %arg4[%c0_16, %c0_17] : memref<3x256xbf16, #tpu.memory_space<vmem>>, vector<1x256xbf16>
    %11 = vector.broadcast %10 : vector<1x256xbf16> to vector<16x256xbf16>
    %12 = arith.mulf %9, %11 : vector<16x256xbf16>
    %c0_18 = arith.constant 0 : index
    %c0_19 = arith.constant 0 : index
    %c112 = arith.constant 112 : index
    %13 = vector.load %arg6[%c0_18, %c0_19, %c112] : memref<1x16x401xbf16, #tpu.memory_space<vmem>>, vector<1x16x256xbf16>
    %14 = vector.shape_cast %13 : vector<1x16x256xbf16> to vector<16x256xbf16>
    %c0_20 = arith.constant 0 : index
    %c0_21 = arith.constant 0 : index
    %c113 = arith.constant 113 : index
    %15 = vector.load %arg6[%c0_20, %c0_21, %c113] : memref<1x16x401xbf16, #tpu.memory_space<vmem>>, vector<1x16x256xbf16>
    %16 = vector.shape_cast %15 : vector<1x16x256xbf16> to vector<16x256xbf16>
    %c2 = arith.constant 2 : index
    %c0_22 = arith.constant 0 : index
    %17 = vector.load %arg4[%c2, %c0_22] : memref<3x256xbf16, #tpu.memory_space<vmem>>, vector<1x256xbf16>
    %18 = vector.broadcast %17 : vector<1x256xbf16> to vector<16x256xbf16>
    %19 = arith.mulf %16, %18 : vector<16x256xbf16>
    %c0_23 = arith.constant 0 : index
    %c0_24 = arith.constant 0 : index
    %c127 = arith.constant 127 : index
    %20 = vector.load %arg6[%c0_23, %c0_24, %c127] : memref<1x16x401xbf16, #tpu.memory_space<vmem>>, vector<1x16x256xbf16>
    %21 = vector.shape_cast %20 : vector<1x16x256xbf16> to vector<16x256xbf16>
    %c0_25 = arith.constant 0 : index
    %c0_26 = arith.constant 0 : index
    %22 = vector.load %arg4[%c0_25, %c0_26] : memref<3x256xbf16, #tpu.memory_space<vmem>>, vector<1x256xbf16>
    %23 = vector.broadcast %22 : vector<1x256xbf16> to vector<16x256xbf16>
    %24 = arith.mulf %21, %23 : vector<16x256xbf16>
    %c0_27 = arith.constant 0 : index
    %c0_28 = arith.constant 0 : index
    %c128_29 = arith.constant 128 : index
    %25 = vector.load %arg6[%c0_27, %c0_28, %c128_29] : memref<1x16x401xbf16, #tpu.memory_space<vmem>>, vector<1x16x256xbf16>
    %26 = vector.shape_cast %25 : vector<1x16x256xbf16> to vector<16x256xbf16>
    %c0_30 = arith.constant 0 : index
    %c0_31 = arith.constant 0 : index
    %c129 = arith.constant 129 : index
    %27 = vector.load %arg6[%c0_30, %c0_31, %c129] : memref<1x16x401xbf16, #tpu.memory_space<vmem>>, vector<1x16x256xbf16>
    %28 = vector.shape_cast %27 : vector<1x16x256xbf16> to vector<16x256xbf16>
    %c2_32 = arith.constant 2 : index
    %c0_33 = arith.constant 0 : index
    %29 = vector.load %arg4[%c2_32, %c0_33] : memref<3x256xbf16, #tpu.memory_space<vmem>>, vector<1x256xbf16>
    %30 = vector.broadcast %29 : vector<1x256xbf16> to vector<16x256xbf16>
    %31 = arith.mulf %28, %30 : vector<16x256xbf16>
    %c0_34 = arith.constant 0 : index
    %c0_35 = arith.constant 0 : index
    %c143 = arith.constant 143 : index
    %32 = vector.load %arg6[%c0_34, %c0_35, %c143] : memref<1x16x401xbf16, #tpu.memory_space<vmem>>, vector<1x16x256xbf16>
    %33 = vector.shape_cast %32 : vector<1x16x256xbf16> to vector<16x256xbf16>
    %c0_36 = arith.constant 0 : index
    %c0_37 = arith.constant 0 : index
    %34 = vector.load %arg4[%c0_36, %c0_37] : memref<3x256xbf16, #tpu.memory_space<vmem>>, vector<1x256xbf16>
    %35 = vector.broadcast %34 : vector<1x256xbf16> to vector<16x256xbf16>
    %36 = arith.mulf %33, %35 : vector<16x256xbf16>
    %c0_38 = arith.constant 0 : index
    %c0_39 = arith.constant 0 : index
    %c144 = arith.constant 144 : index
    %37 = vector.load %arg6[%c0_38, %c0_39, %c144] : memref<1x16x401xbf16, #tpu.memory_space<vmem>>, vector<1x16x256xbf16>
    %38 = vector.shape_cast %37 : vector<1x16x256xbf16> to vector<16x256xbf16>
    %c0_40 = arith.constant 0 : index
    %c0_41 = arith.constant 0 : index
    %c145 = arith.constant 145 : index
    %39 = vector.load %arg6[%c0_40, %c0_41, %c145] : memref<1x16x401xbf16, #tpu.memory_space<vmem>>, vector<1x16x256xbf16>
    %40 = vector.shape_cast %39 : vector<1x16x256xbf16> to vector<16x256xbf16>
    %c2_42 = arith.constant 2 : index
    %c0_43 = arith.constant 0 : index
    %41 = vector.load %arg4[%c2_42, %c0_43] : memref<3x256xbf16, #tpu.memory_space<vmem>>, vector<1x256xbf16>
    %42 = vector.broadcast %41 : vector<1x256xbf16> to vector<16x256xbf16>
    %43 = arith.mulf %40, %42 : vector<16x256xbf16>
    %44 = tpu.concatenate %12, %14, %19, %24, %26, %31, %36, %38, %43 in 0 : vector<16x256xbf16>, vector<16x256xbf16>, vector<16x256xbf16>, vector<16x256xbf16>, vector<16x256xbf16>, vector<16x256xbf16>, vector<16x256xbf16>, vector<16x256xbf16>, vector<16x256xbf16> -> vector<144x256xbf16>
    %c0_44 = arith.constant 0 : index
    %c0_45 = arith.constant 0 : index
    %45 = vector.load %arg2[%c0_44, %c0_45] : memref<8x144xbf16, #tpu.memory_space<vmem>>, vector<8x144xbf16>
    %cst_46 = arith.constant dense<0.000000e+00> : vector<8x256xf32>
    %46 = tpu.matmul %45, %44, %cst_46 {dimension_numbers = #tpu.dot_dimension_numbers<[1], [0], [0], [1], [0, 0, 1, 1], [], []>} : vector<8x144xbf16>, vector<144x256xbf16>, vector<8x256xf32> -> vector<8x256xf32>
    %c0_47 = arith.constant 0 : index
    %c0_48 = arith.constant 0 : index
    %47 = vector.load %arg3[%c0_47, %c0_48] : memref<8x1xf32, #tpu.memory_space<vmem>>, vector<8x1xf32>
    %48 = vector.broadcast %47 : vector<8x1xf32> to vector<8x256xf32>
    %49 = arith.addf %46, %48 : vector<8x256xf32>
    %c0_49 = arith.constant 0 : index
    %c0_50 = arith.constant 0 : index
    %c0_51 = arith.constant 0 : index
    %50 = vector.load %arg5[%c0_49, %c0_50, %c0_51] : memref<1x8x256xf32, #tpu.memory_space<vmem>>, vector<1x8x256xf32>
    %51 = vector.shape_cast %50 : vector<1x8x256xf32> to vector<8x256xf32>
    %52 = vector.shape_cast %49 : vector<8x256xf32> to vector<1x8x256xf32>
    tpu.vector_store %arg5[%c0_49, %c0_50, %c0_51], %52 {strides = array<i32>} : memref<1x8x256xf32, #tpu.memory_space<vmem>>, vector<1x8x256xf32>,
    return
  }
  func.func @transform_0(%arg0: i32) -> (i32, i32, i32) {
    %c0_i32 = arith.constant 0 : i32
    %c0_i32_0 = arith.constant 0 : i32
    %c0_i32_1 = arith.constant 0 : i32
    return %arg0, %c0_i32, %c0_i32_0 : i32, i32, i32
  }
  func.func @transform_1(%arg0: i32) -> (i32, i32) {
    %c0_i32 = arith.constant 0 : i32
    %c0_i32_0 = arith.constant 0 : i32
    %c0_i32_1 = arith.constant 0 : i32
    return %c0_i32, %c0_i32_0 : i32, i32
  }
  func.func @transform_2(%arg0: i32) -> (i32, i32) {
    %c0_i32 = arith.constant 0 : i32
    %c0_i32_0 = arith.constant 0 : i32
    %c0_i32_1 = arith.constant 0 : i32
    return %c0_i32, %c0_i32_0 : i32, i32
  }
  func.func @transform_3(%arg0: i32) -> (i32, i32) {
    %c0_i32 = arith.constant 0 : i32
    %c0_i32_0 = arith.constant 0 : i32
    %c0_i32_1 = arith.constant 0 : i32
    return %c0_i32, %c0_i32_0 : i32, i32
  }
  func.func @transform_4(%arg0: i32) -> (i32, i32, i32) {
    %c0_i32 = arith.constant 0 : i32
    %c0_i32_0 = arith.constant 0 : i32
    %c0_i32_1 = arith.constant 0 : i32
    return %arg0, %c0_i32, %c0_i32_0 : i32, i32, i32
  }
}

</mosaic_0001>

<llo_original>
// kernel: tpu_custom_call.1
$region0: #{tpu_custom_call.1}
  #allocation0 [shape = 'u32[]', space=smem, size = 0x4, offset = 0x4, fixed_abs, tag = 'smem constant byte address 0x4 - core index']
  #allocation1 [shape = 'u32[144,128]{1,0:T(1,128)}', space=vmem, size = 0x12000, scoped, tag = 'internal scratch']
  #allocation2 [shape = 'bf16[1,16,401]{2,1,0:T(16,128)(2,1)}', space=vmem, size = 0x4000, scoped, tag = 'scratch operand']
  %s0 = inlined_call_operand.vmem [shape: bf16[2,4,256], index: 0, kind: input, shape index: {}]
  %s1 = inlined_call_operand.hbm [shape: bf16[8,144], index: 1, kind: input, shape index: {}]
  %s2 = inlined_call_operand.vmem [shape: f32[8,1], index: 2, kind: input, shape index: {}]
  %s3 = inlined_call_operand.vmem [shape: bf16[3,256], index: 3, kind: input, shape index: {}]
  %s4 = inlined_call_operand.hbm [shape: f32[2,8,256], index: 4, kind: output, shape index: {}]
  %s5 = sld [smem:[#allocation0]]
  $region53: #{tpu_custom_call.1} parent=0
    _
  %s7 = ssub.s32 1, %s5
  %s8 = scalar_select 0, %s7, %s5
  $region1: #{tpu_custom_call.1} parent=0
    #allocation3 [shape = 'u8[4096]{0}', space=vmem, size = 0x1000, scoped, tag = 'input window, operand 1, single buffered']
    #allocation4 [shape = 's32[2]{0}', space=sflag, size = 0x8, scoped, tag = 'scoped memory for tpu_custom_call.1']
    #allocation5 [shape = 's32[2]{0}', space=sflag, size = 0x8, scoped, tag = 'scoped memory for tpu_custom_call.1']
    #allocation6 [shape = 'u8[16384]{0}', space=vmem, size = 0x4000, scoped, tag = 'output window, operand 0']
    %9 = vsyncpa [#allocation4], 0
    %10 = vsyncpa [#allocation5], 0
    %s11 = scalar_lea.sflag [#allocation5], 1
    %12 = vsyncpa %s11, 0
    loop: start=0, step=1, limit=4
    $region2: #{tpu_custom_call.1} parent=1 // loop_pre_header
      _
    $region3: #{tpu_custom_call.1} parent=1 // loop_header
      %s14 = sphi 0, %s18
      %p15 = scmp.ge.s32.totalorder %s14, 4
      %s24 = sphi 0, %s26
      %s27 = sphi 0, %s24
      %s28 = sphi 0, %s27
      %s44 = sphi 0, %s28
      %s48 = sphi 0, %s48
      %s50 = sphi 0, %s48
      %s51 = sphi 0, %s50
      %s65 = sphi 0, %s51
      %s69 = sphi 0, %s69
      %s71 = sphi 0, %s69
      %s72 = sphi 0, %s71
      %s86 = sphi 0, %s72
      %s90 = sphi 0, %s90
      %s92 = sphi 0, %s90
      %s93 = sphi 0, %s92
      %s107 = sphi 0, %s93
      %s113 = sphi 0, %s115
      %s116 = sphi 0, %s113
      %s117 = sphi 0, %s116
      %s133 = sphi 0, %s117
    $region4: #{tpu_custom_call.1} parent=1 // loop_header_branch
      %17 = sbr.rel (%p15) target = $region8
    $region5: #{tpu_custom_call.1} parent=1 // loop_body
      %s19 = ssub.s32 %s14, 1
      %s20 = ssub.s32 %s14, 2
      %s21 = sadd.s32 %s14, 1
      %s22 = ssub.s32 %s14, %s21
      %p23 = scmp.eq.s32.totalorder %s22, 0
      %s25 = sadd.s32 %s24, 1
      %s26 = scalar_select %p23, %s24, %s25
      %p29 = pneg %p23
      %p30 = scmp.eq.s32.totalorder %s14, 1
      %p31 = por %p29, %p30
      %p32 = scmp.ne.s32.totalorder %s24, %s27
      %p33 = scmp.eq.s32.totalorder %s14, 0
      %p34 = por %p32, %p33
      %p35 = scmp.ne.s32.totalorder %s24, %s27
      %p36 = scmp.eq.s32.totalorder %s19, 1
      %p37 = por %p35, %p36
      %p38 = scmp.ne.s32.totalorder %s27, %s28
      %p39 = scmp.eq.s32.totalorder %s19, 0
      %p40 = por %p38, %p39
      %p41 = scmp.ne.s32.totalorder %s27, %s28
      %p42 = scmp.eq.s32.totalorder %s20, 1
      %p43 = por %p41, %p42
      %p45 = scmp.ne.s32.totalorder %s28, %s44
      %p46 = scmp.eq.s32.totalorder %s20, 0
      %p47 = por %p45, %p46
      %s49 = sadd.s32 %s48, 1
      %p52 = scmp.eq.s32.totalorder %s14, 1
      %p53 = scmp.ne.s32.totalorder %s48, %s50
      %p54 = scmp.eq.s32.totalorder %s14, 0
      %p55 = por %p53, %p54
      %p56 = scmp.ne.s32.totalorder %s48, %s50
      %p57 = scmp.eq.s32.totalorder %s19, 1
      %p58 = por %p56, %p57
      %p59 = scmp.ne.s32.totalorder %s50, %s51
      %p60 = scmp.eq.s32.totalorder %s19, 0
      %p61 = por %p59, %p60
      %p62 = scmp.ne.s32.totalorder %s50, %s51
      %p63 = scmp.eq.s32.totalorder %s20, 1
      %p64 = por %p62, %p63
      %p66 = scmp.ne.s32.totalorder %s51, %s65
      %p67 = scmp.eq.s32.totalorder %s20, 0
      %p68 = por %p66, %p67
      %s70 = sadd.s32 %s69, 1
      %p73 = scmp.eq.s32.totalorder %s14, 1
      %p74 = scmp.ne.s32.totalorder %s69, %s71
      %p75 = scmp.eq.s32.totalorder %s14, 0
      %p76 = por %p74, %p75
      %p77 = scmp.ne.s32.totalorder %s69, %s71
      %p78 = scmp.eq.s32.totalorder %s19, 1
      %p79 = por %p77, %p78
      %p80 = scmp.ne.s32.totalorder %s71, %s72
      %p81 = scmp.eq.s32.totalorder %s19, 0
      %p82 = por %p80, %p81
      %p83 = scmp.ne.s32.totalorder %s71, %s72
      %p84 = scmp.eq.s32.totalorder %s20, 1
      %p85 = por %p83, %p84
      %p87 = scmp.ne.s32.totalorder %s72, %s86
      %p88 = scmp.eq.s32.totalorder %s20, 0
      %p89 = por %p87, %p88
      %s91 = sadd.s32 %s90, 1
      %p94 = scmp.eq.s32.totalorder %s14, 1
      %p95 = scmp.ne.s32.totalorder %s90, %s92
      %p96 = scmp.eq.s32.totalorder %s14, 0
      %p97 = por %p95, %p96
      %p98 = scmp.ne.s32.totalorder %s90, %s92
      %p99 = scmp.eq.s32.totalorder %s19, 1
      %p100 = por %p98, %p99
      %p101 = scmp.ne.s32.totalorder %s92, %s93
      %p102 = scmp.eq.s32.totalorder %s19, 0
      %p103 = por %p101, %p102
      %p104 = scmp.ne.s32.totalorder %s92, %s93
      %p105 = scmp.eq.s32.totalorder %s20, 1
      %p106 = por %p104, %p105
      %p108 = scmp.ne.s32.totalorder %s93, %s107
      %p109 = scmp.eq.s32.totalorder %s20, 0
      %p110 = por %p108, %p109
      %s111 = ssub.s32 %s14, %s21
      %p112 = scmp.eq.s32.totalorder %s111, 0
      %s114 = sadd.s32 %s113, 1
      %s115 = scalar_select %p112, %s113, %s114
      %p118 = pneg %p112
      %p119 = scmp.eq.s32.totalorder %s14, 1
      %p120 = por %p118, %p119
      %p121 = scmp.ne.s32.totalorder %s113, %s116
      %p122 = scmp.eq.s32.totalorder %s14, 0
      %p123 = por %p121, %p122
      %p124 = scmp.ne.s32.totalorder %s113, %s116
      %p125 = scmp.eq.s32.totalorder %s19, 1
      %p126 = por %p124, %p125
      %p127 = scmp.ne.s32.totalorder %s116, %s117
      %p128 = scmp.eq.s32.totalorder %s19, 0
      %p129 = por %p127, %p128
      %p130 = scmp.ne.s32.totalorder %s116, %s117
      %p131 = scmp.eq.s32.totalorder %s20, 1
      %p132 = por %p130, %p131
      %p134 = scmp.ne.s32.totalorder %s117, %s133
      %p135 = scmp.eq.s32.totalorder %s20, 0
      %p136 = por %p134, %p135
      %p137 = scmp.le.s32.totalorder 1, %s14
      %p138 = scmp.lt.s32.totalorder %s14, 3
      %p139 = pnand %p137, %p138
      %p140 = pneg %p139
      // Predicated region
      $region9: #{tpu_custom_call.1} parent=5 // pred_check
        _
      $region10: #{tpu_custom_call.1} parent=5 // pred_check_branch
        %142 = sbr.rel (%p139) target = $region12
      $region11: #{tpu_custom_call.1} parent=5 // pred_region
        %s143 = ssub.s32 %s14, 1
        // Predicated region
        $region13: #{tpu_custom_call.1} parent=11 // pred_check
          %p144 = pneg %p61
        $region14: #{tpu_custom_call.1} parent=11 // pred_check_branch
          %146 = sbr.rel (%p144) target = $region16
        $region15: #{tpu_custom_call.1} parent=11 // pred_region
          %s148 = ssub.s32 128, 128
          %149 = vsyncadd [#allocation4], %s148
          %s151 = sshll.u32 [#allocation3], 4
          %s152 = int_to_ptr.vmem [resolvable:$true] %s151
          %154 = dma.hbm_to_vmem [thread:$0]  %s1, 128, %s152, [#allocation4]
        $region16: #{tpu_custom_call.1} parent=11 // pred_fallthru
          _
        // Predicated region
        $region17: #{tpu_custom_call.1} parent=11 // pred_check
          %p155 = pneg %p82
        $region18: #{tpu_custom_call.1} parent=11 // pred_check_branch
          %157 = sbr.rel (%p155) target = $region20
        $region19: #{tpu_custom_call.1} parent=11 // pred_region
          _
        $region20: #{tpu_custom_call.1} parent=11 // pred_fallthru
          _
        // Predicated region
        $region21: #{tpu_custom_call.1} parent=11 // pred_check
          %p158 = pneg %p103
        $region22: #{tpu_custom_call.1} parent=11 // pred_check_branch
          %160 = sbr.rel (%p158) target = $region24
        $region23: #{tpu_custom_call.1} parent=11 // pred_region
          _
        $region24: #{tpu_custom_call.1} parent=11 // pred_fallthru
          _
      $region12: #{tpu_custom_call.1} parent=5 // pred_fallthru
        _
      %p161 = scmp.lt.s32.totalorder %s14, 2
      // Predicated region
      $region25: #{tpu_custom_call.1} parent=5 // pred_check
        %p162 = pneg %p161
      $region26: #{tpu_custom_call.1} parent=5 // pred_check_branch
        %164 = sbr.rel (%p162) target = $region28
      $region27: #{tpu_custom_call.1} parent=5 // pred_region
        // Predicated region
        $region29: #{tpu_custom_call.1} parent=27 // pred_check
          %p165 = pneg %p34
        $region30: #{tpu_custom_call.1} parent=27 // pred_check_branch
          %167 = sbr.rel (%p165) target = $region32
        $region31: #{tpu_custom_call.1} parent=27 // pred_region
          %p168 = scmp.lt.s32.totalorder %s14, 1
          %s169 = scalar_select %p168, %s14, 1
          %s170 = smul.addr %s169, 2
          %s171 = smul.addr %s170, 2
          %s172 = scalar_lea.vmem %s0, %s171
        $region32: #{tpu_custom_call.1} parent=27 // pred_fallthru
          _
      $region28: #{tpu_custom_call.1} parent=5 // pred_fallthru
        _
      %p173 = scmp.le.s32.totalorder 1, %s14
      %p174 = scmp.lt.s32.totalorder %s14, 3
      %p175 = pnand %p173, %p174
      %p176 = pneg %p175
      // Predicated region
      $region33: #{tpu_custom_call.1} parent=5 // pred_check
        _
      $region34: #{tpu_custom_call.1} parent=5 // pred_check_branch
        %178 = sbr.rel (%p175) target = $region36
      $region35: #{tpu_custom_call.1} parent=5 // pred_region
        %s179 = ssub.s32 %s14, 1
        // Predicated region
        $region37: #{tpu_custom_call.1} parent=35 // pred_check
          %p180 = pneg %p61
        $region38: #{tpu_custom_call.1} parent=35 // pred_check_branch
          %182 = sbr.rel (%p180) target = $region40
        $region39: #{tpu_custom_call.1} parent=35 // pred_region
          %183 = dma.done [#allocation4], 128
        $region40: #{tpu_custom_call.1} parent=35 // pred_fallthru
          _
        %p184 = scmp.lt.s32.totalorder %s19, 1
        %s185 = scalar_select %p184, %s19, 1
        %s186 = smul.addr %s185, 2
        %s187 = smul.addr %s186, 2
        %s188 = scalar_lea.vmem %s0, %s187
        %p189 = pneg %p40
        %p190 = pneg %p37
        %p191 = pneg %p61
        %p192 = pneg %p58
        %p193 = pneg %p82
        %p194 = pneg %p79
        %p195 = pneg %p103
        %p196 = pneg %p100
        %p197 = pneg %p129
        %p198 = pneg %p126
        %s199 = sand.u32 %s116, 1
        %s200 = scalar_lea.sflag [#allocation5], %s199
        %s201 = sand.u32 %s116, 1
        %s202 = smul.addr %s201, 16
        %s203 = scalar_lea.vmem [#allocation6], %s202
        %p204 = scmp.lt.s32.totalorder %s19, 1
        %s205 = scalar_select %p204, %s19, 1
        %s206 = smul.addr %s205, 2
        %s207 = smul.addr %s206, 2
        %s208 = scalar_lea.vmem %s0, %s207
        %210 = vst [vmem:[#allocation2] sm:$0xff] 0
        %vm211 = vcmask 138240
        %212 = vst.msk [vmem:[#allocation2 + $0x18] sm:$0xff] %vm211, 0
        %213 = vst [vmem:[#allocation2 + $0x8] sm:$0xff] 0
        %214 = vst [vmem:[#allocation2 + $0x10] sm:$0xff] 0
        %v215 = vld [vmem:[%s208] sm:$0xf]
        %v218 = vunpack.c.l.s4 1983009808
        %v219 = vunpack.c.0.s8 %v218
        %v220 = vlaneseq
        %v221 = vshrl.u32 %v220, 7
        %v222 = vsub.s32 %v219, %v221
        %v223 = vrot.slane %v215, %v222
        %v224 = vcombine.high %v223, %v223
        %227 = vst [vmem:[#allocation2 + $0x8] sm:$0x3] %v223
        %228 = vst [vmem:[#allocation2 + $0x10] sm:$0x3] %v224
        %v229 = vld [vmem:[#allocation2] sm:$0xff]
        %v230 = vld [vmem:[#allocation2 + $0x8] sm:$0xff]
        %v231 = vld [vmem:[#allocation2 + $0x10] sm:$0xff]
        %v232 = vld [vmem:[%s3] sm:$0x5]
        %v235 = vunpack.c.l.s4 1983009808
        %v236 = vunpack.c.0.s8 %v235
        %v237 = vlaneseq
        %v238 = vshrl.u32 %v237, 7
        %v239 = vsub.s32 %v236, %v238
        %v240 = vrot.slane %v232, %v239
        %v241 = vcombine.high %v240, %v240
        %v243 = vpack.i.b16 %v240, %v240
        %v245 = vlaneseq
        %v246 = vshrl.u32 %v245, 7
        %v247 = vsub.s32 0, %v246
        %v248 = vrot.slane %v243, %v247
        %v250 = vpack.i.b16 %v241, %v241
        %v252 = vlaneseq
        %v253 = vshrl.u32 %v252, 7
        %v254 = vsub.s32 0, %v253
        %v255 = vrot.slane %v250, %v254
        %258 = vrot.lane.b32.xlu0 %v248, 111
        %v259 = vpop.permute.xlu0 %258
        %260 = vrot.lane.b32.xlu0 %v255, 111
        %v261 = vpop.permute.xlu0 %260
        %vm262 = vcmask 908288
        %v263 = vsel %vm262, %v259, %v261
        %v267 = vmul.bf16 %v229, %v259
        %v268 = vmul.bf16 %v230, %v263
        %v269 = vmul.bf16 %v231, %v261
        %v270 = vld [vmem:[%s3] sm:$0xa]
        %v273 = vunpack.c.l.s4 1983009808
        %v274 = vunpack.c.0.s8 %v273
        %v275 = vlaneseq
        %v276 = vshrl.u32 %v275, 7
        %v277 = vsub.s32 %v274, %v276
        %v278 = vrot.slane %v270, %v277
        %v279 = vcombine.high %v278, %v278
        %v281 = vpack.i.b16 %v278, %v278
        %v283 = vlaneseq
        %v284 = vshrl.u32 %v283, 7
        %v285 = vsub.s32 1, %v284
        %v286 = vrot.slane %v281, %v285
        %v288 = vpack.i.b16 %v279, %v279
        %v290 = vlaneseq
        %v291 = vshrl.u32 %v290, 7
        %v292 = vsub.s32 1, %v291
        %v293 = vrot.slane %v288, %v292
        %296 = vrot.lane.b32.xlu0 %v286, 113
        %v297 = vpop.permute.xlu0 %296
        %298 = vrot.lane.b32.xlu0 %v293, 113
        %v299 = vpop.permute.xlu0 %298
        %vm300 = vcmask 924672
        %v301 = vsel %vm300, %v297, %v299
        %v305 = vmul.bf16 %v229, %v297
        %v306 = vmul.bf16 %v230, %v301
        %v307 = vmul.bf16 %v231, %v299
        %308 = vrot.lane.b32.xlu0 %v248, 127
        %v309 = vpop.permute.xlu0 %308
        %310 = vrot.lane.b32.xlu0 %v255, 127
        %v311 = vpop.permute.xlu0 %310
        %vm312 = vcmask 1039360
        %v313 = vsel %vm312, %v309, %v311
        %v317 = vmul.bf16 %v229, %v309
        %v318 = vmul.bf16 %v230, %v313
        %v319 = vmul.bf16 %v231, %v311
        %v320 = vld [vmem:[#allocation2 + $0x18] sm:$0xff]
        %321 = vrot.lane.b32.xlu0 %v286, 1
        %v322 = vpop.permute.xlu0 %321
        %323 = vrot.lane.b32.xlu0 %v293, 1
        %v324 = vpop.permute.xlu0 %323
        %vm325 = vcmask 7168
        %v326 = vsel %vm325, %v322, %v324
        %v330 = vmul.bf16 %v230, %v322
        %v331 = vmul.bf16 %v231, %v326
        %v332 = vmul.bf16 %v320, %v324
        %333 = vrot.lane.b32.xlu0 %v248, 15
        %v334 = vpop.permute.xlu0 %333
        %335 = vrot.lane.b32.xlu0 %v255, 15
        %v336 = vpop.permute.xlu0 %335
        %vm337 = vcmask 121856
        %v338 = vsel %vm337, %v334, %v336
        %v342 = vmul.bf16 %v230, %v334
        %v343 = vmul.bf16 %v231, %v338
        %v344 = vmul.bf16 %v320, %v336
        %345 = vrot.lane.b32.xlu0 %v286, 17
        %v346 = vpop.permute.xlu0 %345
        %347 = vrot.lane.b32.xlu0 %v293, 17
        %v348 = vpop.permute.xlu0 %347
        %vm349 = vcmask 138240
        %v350 = vsel %vm349, %v346, %v348
        %v354 = vmul.bf16 %v230, %v346
        %v355 = vmul.bf16 %v231, %v350
        %v356 = vmul.bf16 %v320, %v348
        %360 = vrot.lane.b32.xlu0 %v229, 127
        %v361 = vpop.permute.xlu0 %360
        %362 = vrot.lane.b32.xlu0 %v230, 127
        %v363 = vpop.permute.xlu0 %362
        %364 = vrot.lane.b32.xlu0 %v231, 127
        %v365 = vpop.permute.xlu0 %364
        %v366 = vsel %vm312, %v361, %v363
        %v367 = vsel %vm312, %v363, %v365
        %371 = vrot.lane.b32.xlu0 %v305, 126
        %v372 = vpop.permute.xlu0 %371
        %373 = vrot.lane.b32.xlu0 %v306, 126
        %v374 = vpop.permute.xlu0 %373
        %375 = vrot.lane.b32.xlu0 %v307, 126
        %v376 = vpop.permute.xlu0 %375
        %vm377 = vcmask 1031168
        %v378 = vsel %vm377, %v372, %v374
        %v379 = vsel %vm377, %v374, %v376
        %383 = vrot.lane.b32.xlu0 %v317, 112
        %v384 = vpop.permute.xlu0 %383
        %385 = vrot.lane.b32.xlu0 %v318, 112
        %v386 = vpop.permute.xlu0 %385
        %387 = vrot.lane.b32.xlu0 %v319, 112
        %v388 = vpop.permute.xlu0 %387
        %vm389 = vcmask 916480
        %v390 = vsel %vm389, %v384, %v386
        %v391 = vsel %vm389, %v386, %v388
        %392 = vrot.lane.b32.xlu0 %v230, 111
        %v393 = vpop.permute.xlu0 %392
        %394 = vrot.lane.b32.xlu0 %v231, 111
        %v395 = vpop.permute.xlu0 %394
        %v396 = vsel %vm262, %v393, %v395
        %400 = vrot.lane.b32.xlu0 %v330, 110
        %v401 = vpop.permute.xlu0 %400
        %402 = vrot.lane.b32.xlu0 %v331, 110
        %v403 = vpop.permute.xlu0 %402
        %404 = vrot.lane.b32.xlu0 %v332, 110
        %v405 = vpop.permute.xlu0 %404
        %vm406 = vcmask 900096
        %v407 = vsel %vm406, %v401, %v403
        %v408 = vsel %vm406, %v403, %v405
        %412 = vrot.lane.b32.xlu0 %v342, 96
        %v413 = vpop.permute.xlu0 %412
        %414 = vrot.lane.b32.xlu0 %v343, 96
        %v415 = vpop.permute.xlu0 %414
        %416 = vrot.lane.b32.xlu0 %v344, 96
        %v417 = vpop.permute.xlu0 %416
        %vm418 = vcmask 785408
        %v419 = vsel %vm418, %v413, %v415
        %v420 = vsel %vm418, %v415, %v417
        %422 = vrot.lane.b32.xlu0 %v230, 95
        %v423 = vpop.permute.xlu0 %422
        %424 = vrot.lane.b32.xlu0 %v231, 95
        %v425 = vpop.permute.xlu0 %424
        %426 = vrot.lane.b32.xlu0 %v320, 95
        %v427 = vpop.permute.xlu0 %426
        %vm428 = vcmask 777216
        %v429 = vsel %vm428, %v423, %v425
        %v430 = vsel %vm428, %v425, %v427
        %434 = vrot.lane.b32.xlu0 %v354, 94
        %v435 = vpop.permute.xlu0 %434
        %436 = vrot.lane.b32.xlu0 %v355, 94
        %v437 = vpop.permute.xlu0 %436
        %438 = vrot.lane.b32.xlu0 %v356, 94
        %v439 = vpop.permute.xlu0 %438
        %vm440 = vcmask 769024
        %v441 = vsel %vm440, %v435, %v437
        %v442 = vsel %vm440, %v437, %v439
        %v443 = vld [vmem:[#allocation3] sm:$0xff]
        %v444 = vld [vmem:[%s2] sm:$0xff]
        %446 = vset.pattern.permute.xlu0 0
        %447 = vperm.xlu0 %446, %v444
        %v448 = vpop.permute.xlu0 %447
        %v451 = vunpack.c.l.b16 %v443
        %v452 = vunpack.c.h.b16 %v443
        %v453 = vpack.c.b16 %v451, %v451
        %v454 = vpack.c.b16 %v452, %v452
        %459 = vrot.lane.b32.xlu0 %v267, 17
        %v460 = vpop.permute.xlu0 %459
        %461 = vrot.lane.b32.xlu0 %v268, 17
        %v462 = vpop.permute.xlu0 %461
        %463 = vrot.lane.b32.xlu0 %v269, 17
        %v464 = vpop.permute.xlu0 %463
        %465 = vrot.lane.b32.xlu0 %v366, 17
        %v466 = vpop.permute.xlu0 %465
        %467 = vrot.lane.b32.xlu0 %v367, 17
        %v468 = vpop.permute.xlu0 %467
        %469 = vrot.lane.b32.xlu0 %v365, 17
        %v470 = vpop.permute.xlu0 %469
        %471 = vrot.lane.b32.xlu0 %v378, 17
        %v472 = vpop.permute.xlu0 %471
        %473 = vrot.lane.b32.xlu0 %v379, 17
        %v474 = vpop.permute.xlu0 %473
        %475 = vrot.lane.b32.xlu0 %v376, 17
        %v476 = vpop.permute.xlu0 %475
        %477 = vrot.lane.b32.xlu0 %v390, 17
        %v478 = vpop.permute.xlu0 %477
        %479 = vrot.lane.b32.xlu0 %v391, 17
        %v480 = vpop.permute.xlu0 %479
        %481 = vrot.lane.b32.xlu0 %v388, 17
        %v482 = vpop.permute.xlu0 %481
        %483 = vrot.lane.b32.xlu0 %v393, 17
        %v484 = vpop.permute.xlu0 %483
        %485 = vrot.lane.b32.xlu0 %v396, 17
        %v486 = vpop.permute.xlu0 %485
        %487 = vrot.lane.b32.xlu0 %v395, 17
        %v488 = vpop.permute.xlu0 %487
        %489 = vrot.lane.b32.xlu0 %v401, 17
        %v490 = vpop.permute.xlu0 %489
        %491 = vrot.lane.b32.xlu0 %v407, 17
        %v492 = vpop.permute.xlu0 %491
        %493 = vrot.lane.b32.xlu0 %v408, 17
        %v494 = vpop.permute.xlu0 %493
        %495 = vrot.lane.b32.xlu0 %v413, 17
        %v496 = vpop.permute.xlu0 %495
        %497 = vrot.lane.b32.xlu0 %v419, 17
        %v498 = vpop.permute.xlu0 %497
        %499 = vrot.lane.b32.xlu0 %v420, 17
        %v500 = vpop.permute.xlu0 %499
        %501 = vrot.lane.b32.xlu0 %v423, 17
        %v502 = vpop.permute.xlu0 %501
        %503 = vrot.lane.b32.xlu0 %v429, 17
        %v504 = vpop.permute.xlu0 %503
        %505 = vrot.lane.b32.xlu0 %v430, 17
        %v506 = vpop.permute.xlu0 %505
        %507 = vrot.lane.b32.xlu0 %v435, 17
        %v508 = vpop.permute.xlu0 %507
        %509 = vrot.lane.b32.xlu0 %v441, 17
        %v510 = vpop.permute.xlu0 %509
        %511 = vrot.lane.b32.xlu0 %v442, 17
        %v512 = vpop.permute.xlu0 %511
        %v513 = vsel %vm349, %v460, %v462
        %v514 = vsel %vm349, %v462, %v464
        %v515 = vsel %vm349, %v466, %v468
        %v516 = vsel %vm349, %v468, %v470
        %v517 = vsel %vm349, %v472, %v474
        %v518 = vsel %vm349, %v474, %v476
        %v519 = vsel %vm349, %v478, %v480
        %v520 = vsel %vm349, %v480, %v482
        %v521 = vsel %vm349, %v484, %v486
        %v522 = vsel %vm349, %v486, %v488
        %v523 = vsel %vm349, %v490, %v492
        %v524 = vsel %vm349, %v492, %v494
        %v525 = vsel %vm349, %v496, %v498
        %v526 = vsel %vm349, %v498, %v500
        %v527 = vsel %vm349, %v502, %v504
        %v528 = vsel %vm349, %v504, %v506
        %v529 = vsel %vm349, %v508, %v510
        %v530 = vsel %vm349, %v510, %v512
        %vm549 = vcmask 130048
        %v551 = vsel %vm549, %v454, 0
        %553 = vmatprep.subr.bf16.mxu0 %v514
        %554 = vmatpush1.bf16.msra.mxu0 %v513
        %555 = vmatprep.subr.bf16.mxu0 %v516
        %556 = vmatpush1.bf16.msra.mxu0 %v515
        %557 = vmatprep.subr.bf16.mxu0 %v518
        %558 = vmatpush1.bf16.msra.mxu0 %v517
        %559 = vmatprep.subr.bf16.mxu0 %v520
        %560 = vmatpush1.bf16.msra.mxu0 %v519
        %561 = vmatprep.subr.bf16.mxu0 %v522
        %562 = vmatpush1.bf16.msra.mxu0 %v521
        %563 = vmatprep.subr.bf16.mxu0 %v524
        %564 = vmatpush1.bf16.msra.mxu0 %v523
        %565 = vmatprep.subr.bf16.mxu0 %v526
        %566 = vmatpush1.bf16.msra.mxu0 %v525
        %567 = vmatprep.subr.bf16.mxu0 %v528
        %568 = vmatpush1.bf16.msra.mxu0 %v527
        %569 = vmatprep.subr.bf16.mxu0 %v530
        %570 = vmatpush1.bf16.msra.mxu0 %v529
        %571 = vmatprep.subr.bf16.mxu0 0
        %572 = vmatpush1.bf16.msra.mxu0 0
        %573 = vmatprep.subr.bf16.mxu0 0
        %574 = vmatpush1.bf16.msra.mxu0 0
        %575 = vmatprep.subr.bf16.mxu0 0
        %576 = vmatpush1.bf16.msra.mxu0 0
        %577 = vmatprep.subr.bf16.mxu0 0
        %578 = vmatpush1.bf16.msra.mxu0 0
        %579 = vmatprep.subr.bf16.mxu0 0
        %580 = vmatpush1.bf16.msra.mxu0 0
        %581 = vmatprep.subr.bf16.mxu0 0
        %582 = vmatpush1.bf16.msra.mxu0 0
        %583 = vmatprep.subr.bf16.mxu0 0
        %584 = vmatpush1.bf16.msra.mxu0 0
        %585 = vmatprep.mubr.bf16.mxu0 %v551
        %586 = vmatmul.mubr.bf16.gmra.mrb[0].mxu0 %v453
        %v587 = vpop.f32.mrb[0].mxu0
        %v588 = vadd.f32 %v448, %v587
        %v589 = vpop.f32.mrb[0].mxu0
        %v590 = vadd.f32 %v448, %v589
        %v591 = vpop.f32.mrb[0].mxu0
        %v592 = vpop.f32.mrb[0].mxu0
        %593 = vdwg.mxu0
        %594 = vst [vmem:[%s203] sm:$0xff] %v588
        %595 = vst [vmem:[%s203 + $0x8] sm:$0xff] %v590
        %s596 = sand.u32 %s116, 1
        %s597 = scalar_lea.sflag [#allocation5], %s596
        %s598 = sand.u32 %s116, 1
        %s599 = smul.addr %s598, 16
        %s600 = scalar_lea.vmem [#allocation6], %s599
        // Predicated region
        $region41: #{tpu_custom_call.1} parent=35 // pred_check
          %p601 = pneg %p126
        $region42: #{tpu_custom_call.1} parent=35 // pred_check_branch
          %603 = sbr.rel (%p601) target = $region44
        $region43: #{tpu_custom_call.1} parent=35 // pred_region
          %s605 = ssub.s32 256, 256
          %606 = vsyncadd %s597, %s605
          %s607 = smul.addr %s19, 2
          %s608 = smul.addr %s607, 128
          %s609 = scalar_lea.hbm %s4, %s608
          %s611 = sshll.u32 %s600, 4
          %s612 = int_to_ptr.vmem [resolvable:$true] %s611
          %614 = dma.vmem_to_hbm [thread:$0]  %s612, 256, %s609, %s597
        $region44: #{tpu_custom_call.1} parent=35 // pred_fallthru
          _
      $region36: #{tpu_custom_call.1} parent=5 // pred_fallthru
        _
      %p615 = scmp.le.s32.totalorder 2, %s14
      // Predicated region
      $region45: #{tpu_custom_call.1} parent=5 // pred_check
        %p616 = pneg %p615
      $region46: #{tpu_custom_call.1} parent=5 // pred_check_branch
        %618 = sbr.rel (%p616) target = $region48
      $region47: #{tpu_custom_call.1} parent=5 // pred_region
        %s619 = ssub.s32 %s14, 2
        // Predicated region
        $region49: #{tpu_custom_call.1} parent=47 // pred_check
          %p620 = pneg %p132
        $region50: #{tpu_custom_call.1} parent=47 // pred_check_branch
          %622 = sbr.rel (%p620) target = $region52
        $region51: #{tpu_custom_call.1} parent=47 // pred_region
          %s623 = sand.u32 %s117, 1
          %s624 = scalar_lea.sflag [#allocation5], %s623
          %s625 = sand.u32 %s117, 1
          %s626 = smul.addr %s625, 16
          %s627 = scalar_lea.vmem [#allocation6], %s626
          %628 = dma.done %s624, 256
        $region52: #{tpu_custom_call.1} parent=47 // pred_fallthru
          _
      $region48: #{tpu_custom_call.1} parent=5 // pred_fallthru
        _
    $region6: #{tpu_custom_call.1} parent=1 // loop_footer
      %s18 = sadd.s32 1, %s14
    $region7: #{tpu_custom_call.1} parent=1 // loop_footer_branch
      %13 = sbr.rel target = $region3
    $region8: #{tpu_custom_call.1} parent=1 // loop_exit
      _
    %629 = vsyncpa [#allocation4], 1
    %s630 = scalar_lea.sflag [#allocation4], 1
    %631 = vsyncpa %s630, 1
    %632 = vsyncpa [#allocation5], 1
    %s633 = scalar_lea.sflag [#allocation5], 1
    %634 = vsyncpa %s633, 1

// kernel: tpu_custom_call.1
$region0: #{tpu_custom_call.1}
  #allocation0 [shape = 'u32[]', space=smem, size = 0x4, offset = 0x4, fixed_abs, tag = 'smem constant byte address 0x4 - core index']
  #allocation1 [shape = 'u32[144,128]{1,0:T(1,128)}', space=vmem, size = 0x12000, scoped, tag = 'internal scratch']
  #allocation2 [shape = 'bf16[1,16,401]{2,1,0:T(16,128)(2,1)}', space=vmem, size = 0x4000, scoped, tag = 'scratch operand']
  %s0 = inlined_call_operand.vmem [shape: bf16[2,4,256], index: 0, kind: input, shape index: {}]
  %s1 = inlined_call_operand.hbm [shape: bf16[8,144], index: 1, kind: input, shape index: {}]
  %s2 = inlined_call_operand.vmem [shape: f32[8,1], index: 2, kind: input, shape index: {}]
  %s3 = inlined_call_operand.vmem [shape: bf16[3,256], index: 3, kind: input, shape index: {}]
  %s4 = inlined_call_operand.hbm [shape: f32[2,8,256], index: 4, kind: output, shape index: {}]
  %s5 = sld [smem:[#allocation0]]
  $region53: #{tpu_custom_call.1} parent=0
    _
  %s7 = ssub.s32 1, %s5
  %s8 = scalar_select 0, %s7, %s5
  $region1: #{tpu_custom_call.1} parent=0
    #allocation3 [shape = 'u8[4096]{0}', space=vmem, size = 0x1000, scoped, tag = 'input window, operand 1, single buffered']
    #allocation4 [shape = 's32[2]{0}', space=sflag, size = 0x8, scoped, tag = 'scoped memory for tpu_custom_call.1']
    #allocation5 [shape = 's32[2]{0}', space=sflag, size = 0x8, scoped, tag = 'scoped memory for tpu_custom_call.1']
    #allocation6 [shape = 'u8[16384]{0}', space=vmem, size = 0x4000, scoped, tag = 'output window, operand 0']
    %9 = vsyncpa [#allocation4], 0
    %10 = vsyncpa [#allocation5], 0
    %s11 = scalar_lea.sflag [#allocation5], 1
    %12 = vsyncpa %s11, 0
    loop: start=0, step=1, limit=4
    $region2: #{tpu_custom_call.1} parent=1 // loop_pre_header
      _
    $region3: #{tpu_custom_call.1} parent=1 // loop_header
      %s14 = sphi 0, %s18
      %p15 = scmp.ge.s32.totalorder %s14, 4
      %s24 = sphi 0, %s26
      %s27 = sphi 0, %s24
      %s28 = sphi 0, %s27
      %s44 = sphi 0, %s28
      %s48 = sphi 0, %s48
      %s50 = sphi 0, %s48
      %s51 = sphi 0, %s50
      %s65 = sphi 0, %s51
      %s69 = sphi 0, %s69
      %s71 = sphi 0, %s69
      %s72 = sphi 0, %s71
      %s86 = sphi 0, %s72
      %s90 = sphi 0, %s90
      %s92 = sphi 0, %s90
      %s93 = sphi 0, %s92
      %s107 = sphi 0, %s93
      %s113 = sphi 0, %s115
      %s116 = sphi 0, %s113
      %s117 = sphi 0, %s116
      %s133 = sphi 0, %s117
    $region4: #{tpu_custom_call.1} parent=1 // loop_header_branch
      %17 = sbr.rel (%p15) target = $region8
    $region5: #{tpu_custom_call.1} parent=1 // loop_body
      %s19 = ssub.s32 %s14, 1
      %s20 = ssub.s32 %s14, 2
      %s21 = sadd.s32 %s14, 1
      %s22 = ssub.s32 %s14, %s21
      %p23 = scmp.eq.s32.totalorder %s22, 0
      %s25 = sadd.s32 %s24, 1
      %s26 = scalar_select %p23, %s24, %s25
      %p29 = pneg %p23
      %p30 = scmp.eq.s32.totalorder %s14, 1
      %p31 = por %p29, %p30
      %p32 = scmp.ne.s32.totalorder %s24, %s27
      %p33 = scmp.eq.s32.totalorder %s14, 0
      %p34 = por %p32, %p33
      %p35 = scmp.ne.s32.totalorder %s24, %s27
      %p36 = scmp.eq.s32.totalorder %s19, 1
      %p37 = por %p35, %p36
      %p38 = scmp.ne.s32.totalorder %s27, %s28
      %p39 = scmp.eq.s32.totalorder %s19, 0
      %p40 = por %p38, %p39
      %p41 = scmp.ne.s32.totalorder %s27, %s28
      %p42 = scmp.eq.s32.totalorder %s20, 1
      %p43 = por %p41, %p42
      %p45 = scmp.ne.s32.totalorder %s28, %s44
      %p46 = scmp.eq.s32.totalorder %s20, 0
      %p47 = por %p45, %p46
      %s49 = sadd.s32 %s48, 1
      %p52 = scmp.eq.s32.totalorder %s14, 1
      %p53 = scmp.ne.s32.totalorder %s48, %s50
      %p54 = scmp.eq.s32.totalorder %s14, 0
      %p55 = por %p53, %p54
      %p56 = scmp.ne.s32.totalorder %s48, %s50
      %p57 = scmp.eq.s32.totalorder %s19, 1
      %p58 = por %p56, %p57
      %p59 = scmp.ne.s32.totalorder %s50, %s51
      %p60 = scmp.eq.s32.totalorder %s19, 0
      %p61 = por %p59, %p60
      %p62 = scmp.ne.s32.totalorder %s50, %s51
      %p63 = scmp.eq.s32.totalorder %s20, 1
      %p64 = por %p62, %p63
      %p66 = scmp.ne.s32.totalorder %s51, %s65
      %p67 = scmp.eq.s32.totalorder %s20, 0
      %p68 = por %p66, %p67
      %s70 = sadd.s32 %s69, 1
      %p73 = scmp.eq.s32.totalorder %s14, 1
      %p74 = scmp.ne.s32.totalorder %s69, %s71
      %p75 = scmp.eq.s32.totalorder %s14, 0
      %p76 = por %p74, %p75
      %p77 = scmp.ne.s32.totalorder %s69, %s71
      %p78 = scmp.eq.s32.totalorder %s19, 1
      %p79 = por %p77, %p78
      %p80 = scmp.ne.s32.totalorder %s71, %s72
      %p81 = scmp.eq.s32.totalorder %s19, 0
      %p82 = por %p80, %p81
      %p83 = scmp.ne.s32.totalorder %s71, %s72
      %p84 = scmp.eq.s32.totalorder %s20, 1
      %p85 = por %p83, %p84
      %p87 = scmp.ne.s32.totalorder %s72, %s86
      %p88 = scmp.eq.s32.totalorder %s20, 0
      %p89 = por %p87, %p88
      %s91 = sadd.s32 %s90, 1
      %p94 = scmp.eq.s32.totalorder %s14, 1
      %p95 = scmp.ne.s32.totalorder %s90, %s92
      %p96 = scmp.eq.s32.totalorder %s14, 0
      %p97 = por %p95, %p96
      %p98 = scmp.ne.s32.totalorder %s90, %s92
      %p99 = scmp.eq.s32.totalorder %s19, 1
      %p100 = por %p98, %p99
      %p101 = scmp.ne.s32.totalorder %s92, %s93
      %p102 = scmp.eq.s32.totalorder %s19, 0
      %p103 = por %p101, %p102
      %p104 = scmp.ne.s32.totalorder %s92, %s93
      %p105 = scmp.eq.s32.totalorder %s20, 1
      %p106 = por %p104, %p105
      %p108 = scmp.ne.s32.totalorder %s93, %s107
      %p109 = scmp.eq.s32.totalorder %s20, 0
      %p110 = por %p108, %p109
      %s111 = ssub.s32 %s14, %s21
      %p112 = scmp.eq.s32.totalorder %s111, 0
      %s114 = sadd.s32 %s113, 1
      %s115 = scalar_select %p112, %s113, %s114
      %p118 = pneg %p112
      %p119 = scmp.eq.s32.totalorder %s14, 1
      %p120 = por %p118, %p119
      %p121 = scmp.ne.s32.totalorder %s113, %s116
      %p122 = scmp.eq.s32.totalorder %s14, 0
      %p123 = por %p121, %p122
      %p124 = scmp.ne.s32.totalorder %s113, %s116
      %p125 = scmp.eq.s32.totalorder %s19, 1
      %p126 = por %p124, %p125
      %p127 = scmp.ne.s32.totalorder %s116, %s117
      %p128 = scmp.eq.s32.totalorder %s19, 0
      %p129 = por %p127, %p128
      %p130 = scmp.ne.s32.totalorder %s116, %s117
      %p131 = scmp.eq.s32.totalorder %s20, 1
      %p132 = por %p130, %p131
      %p134 = scmp.ne.s32.totalorder %s117, %s133
      %p135 = scmp.eq.s32.totalorder %s20, 0
      %p136 = por %p134, %p135
      %p137 = scmp.le.s32.totalorder 1, %s14
      %p138 = scmp.lt.s32.totalorder %s14, 3
      %p139 = pnand %p137, %p138
      %p140 = pneg %p139
      // Predicated region
      $region9: #{tpu_custom_call.1} parent=5 // pred_check
        _
      $region10: #{tpu_custom_call.1} parent=5 // pred_check_branch
        %142 = sbr.rel (%p139) target = $region12
      $region11: #{tpu_custom_call.1} parent=5 // pred_region
        %s143 = ssub.s32 %s14, 1
        // Predicated region
        $region13: #{tpu_custom_call.1} parent=11 // pred_check
          %p144 = pneg %p61
        $region14: #{tpu_custom_call.1} parent=11 // pred_check_branch
          %146 = sbr.rel (%p144) target = $region16
        $region15: #{tpu_custom_call.1} parent=11 // pred_region
          %s148 = ssub.s32 128, 128
          %149 = vsyncadd [#allocation4], %s148
          %s151 = sshll.u32 [#allocation3], 4
          %s152 = int_to_ptr.vmem [resolvable:$true] %s151
          %154 = dma.hbm_to_vmem [thread:$0]  %s1, 128, %s152, [#allocation4]
        $region16: #{tpu_custom_call.1} parent=11 // pred_fallthru
          _
        // Predicated region
        $region17: #{tpu_custom_call.1} parent=11 // pred_check
          %p155 = pneg %p82
        $region18: #{tpu_custom_call.1} parent=11 // pred_check_branch
          %157 = sbr.rel (%p155) target = $region20
        $region19: #{tpu_custom_call.1} parent=11 // pred_region
          _
        $region20: #{tpu_custom_call.1} parent=11 // pred_fallthru
          _
        // Predicated region
        $region21: #{tpu_custom_call.1} parent=11 // pred_check
          %p158 = pneg %p103
        $region22: #{tpu_custom_call.1} parent=11 // pred_check_branch
          %160 = sbr.rel (%p158) target = $region24
        $region23: #{tpu_custom_call.1} parent=11 // pred_region
          _
        $region24: #{tpu_custom_call.1} parent=11 // pred_fallthru
          _
      $region12: #{tpu_custom_call.1} parent=5 // pred_fallthru
        _
      %p161 = scmp.lt.s32.totalorder %s14, 2
      // Predicated region
      $region25: #{tpu_custom_call.1} parent=5 // pred_check
        %p162 = pneg %p161
      $region26: #{tpu_custom_call.1} parent=5 // pred_check_branch
        %164 = sbr.rel (%p162) target = $region28
      $region27: #{tpu_custom_call.1} parent=5 // pred_region
        // Predicated region
        $region29: #{tpu_custom_call.1} parent=27 // pred_check
          %p165 = pneg %p34
        $region30: #{tpu_custom_call.1} parent=27 // pred_check_branch
          %167 = sbr.rel (%p165) target = $region32
        $region31: #{tpu_custom_call.1} parent=27 // pred_region
          %p168 = scmp.lt.s32.totalorder %s14, 1
          %s169 = scalar_select %p168, %s14, 1
          %s170 = smul.addr %s169, 2
          %s171 = smul.addr %s170, 2
          %s172 = scalar_lea.vmem %s0, %s171
        $region32: #{tpu_custom_call.1} parent=27 // pred_fallthru
          _
      $region28: #{tpu_custom_call.1} parent=5 // pred_fallthru
        _
      %p173 = scmp.le.s32.totalorder 1, %s14
      %p174 = scmp.lt.s32.totalorder %s14, 3
      %p175 = pnand %p173, %p174
      %p176 = pneg %p175
      // Predicated region
      $region33: #{tpu_custom_call.1} parent=5 // pred_check
        _
      $region34: #{tpu_custom_call.1} parent=5 // pred_check_branch
        %178 = sbr.rel (%p175) target = $region36
      $region35: #{tpu_custom_call.1} parent=5 // pred_region
        %s179 = ssub.s32 %s14, 1
        // Predicated region
        $region37: #{tpu_custom_call.1} parent=35 // pred_check
          %p180 = pneg %p61
        $region38: #{tpu_custom_call.1} parent=35 // pred_check_branch
          %182 = sbr.rel (%p180) target = $region40
        $region39: #{tpu_custom_call.1} parent=35 // pred_region
          %183 = dma.done [#allocation4], 128
        $region40: #{tpu_custom_call.1} parent=35 // pred_fallthru
          _
        %p184 = scmp.lt.s32.totalorder %s19, 1
        %s185 = scalar_select %p184, %s19, 1
        %s186 = smul.addr %s185, 2
        %s187 = smul.addr %s186, 2
        %s188 = scalar_lea.vmem %s0, %s187
        %p189 = pneg %p40
        %p190 = pneg %p37
        %p191 = pneg %p61
        %p192 = pneg %p58
        %p193 = pneg %p82
        %p194 = pneg %p79
        %p195 = pneg %p103
        %p196 = pneg %p100
        %p197 = pneg %p129
        %p198 = pneg %p126
        %s199 = sand.u32 %s116, 1
        %s200 = scalar_lea.sflag [#allocation5], %s199
        %s201 = sand.u32 %s116, 1
        %s202 = smul.addr %s201, 16
        %s203 = scalar_lea.vmem [#allocation6], %s202
        %p204 = scmp.lt.s32.totalorder %s19, 1
        %s205 = scalar_select %p204, %s19, 1
        %s206 = smul.addr %s205, 2
        %s207 = smul.addr %s206, 2
        %s208 = scalar_lea.vmem %s0, %s207
        %210 = vst [vmem:[#allocation2] sm:$0xff] 0
        %vm211 = vcmask 138240
        %212 = vst.msk [vmem:[#allocation2 + $0x18] sm:$0xff] %vm211, 0
        %213 = vst [vmem:[#allocation2 + $0x8] sm:$0xff] 0
        %214 = vst [vmem:[#allocation2 + $0x10] sm:$0xff] 0
        %v215 = vld [vmem:[%s208] sm:$0xf]
        %v218 = vunpack.c.l.s4 1983009808
        %v219 = vunpack.c.0.s8 %v218
        %v220 = vlaneseq
        %v221 = vshrl.u32 %v220, 7
        %v222 = vsub.s32 %v219, %v221
        %v223 = vrot.slane %v215, %v222
        %v224 = vcombine.high %v223, %v223
        %227 = vst [vmem:[#allocation2 + $0x8] sm:$0x3] %v223
        %228 = vst [vmem:[#allocation2 + $0x10] sm:$0x3] %v224
        %v229 = vld [vmem:[#allocation2] sm:$0xff]
        %v230 = vld [vmem:[#allocation2 + $0x8] sm:$0xff]
        %v231 = vld [vmem:[#allocation2 + $0x10] sm:$0xff]
        %v232 = vld [vmem:[%s3] sm:$0x5]
        %v235 = vunpack.c.l.s4 1983009808
        %v236 = vunpack.c.0.s8 %v235
        %v237 = vlaneseq
        %v238 = vshrl.u32 %v237, 7
        %v239 = vsub.s32 %v236, %v238
        %v240 = vrot.slane %v232, %v239
        %v241 = vcombine.high %v240, %v240
        %v243 = vpack.i.b16 %v240, %v240
        %v245 = vlaneseq
        %v246 = vshrl.u32 %v245, 7
        %v247 = vsub.s32 0, %v246
        %v248 = vrot.slane %v243, %v247
        %v250 = vpack.i.b16 %v241, %v241
        %v252 = vlaneseq
        %v253 = vshrl.u32 %v252, 7
        %v254 = vsub.s32 0, %v253
        %v255 = vrot.slane %v250, %v254
        %258 = vrot.lane.b32.xlu0 %v248, 111
        %v259 = vpop.permute.xlu0 %258
        %260 = vrot.lane.b32.xlu0 %v255, 111
        %v261 = vpop.permute.xlu0 %260
        %vm262 = vcmask 908288
        %v263 = vsel %vm262, %v259, %v261
        %v267 = vmul.bf16 %v229, %v259
        %v268 = vmul.bf16 %v230, %v263
        %v269 = vmul.bf16 %v231, %v261
        %v270 = vld [vmem:[%s3] sm:$0xa]
        %v273 = vunpack.c.l.s4 1983009808
        %v274 = vunpack.c.0.s8 %v273
        %v275 = vlaneseq
        %v276 = vshrl.u32 %v275, 7
        %v277 = vsub.s32 %v274, %v276
        %v278 = vrot.slane %v270, %v277
        %v279 = vcombine.high %v278, %v278
        %v281 = vpack.i.b16 %v278, %v278
        %v283 = vlaneseq
        %v284 = vshrl.u32 %v283, 7
        %v285 = vsub.s32 1, %v284
        %v286 = vrot.slane %v281, %v285
        %v288 = vpack.i.b16 %v279, %v279
        %v290 = vlaneseq
        %v291 = vshrl.u32 %v290, 7
        %v292 = vsub.s32 1, %v291
        %v293 = vrot.slane %v288, %v292
        %296 = vrot.lane.b32.xlu0 %v286, 113
        %v297 = vpop.permute.xlu0 %296
        %298 = vrot.lane.b32.xlu0 %v293, 113
        %v299 = vpop.permute.xlu0 %298
        %vm300 = vcmask 924672
        %v301 = vsel %vm300, %v297, %v299
        %v305 = vmul.bf16 %v229, %v297
        %v306 = vmul.bf16 %v230, %v301
        %v307 = vmul.bf16 %v231, %v299
        %308 = vrot.lane.b32.xlu0 %v248, 127
        %v309 = vpop.permute.xlu0 %308
        %310 = vrot.lane.b32.xlu0 %v255, 127
        %v311 = vpop.permute.xlu0 %310
        %vm312 = vcmask 1039360
        %v313 = vsel %vm312, %v309, %v311
        %v317 = vmul.bf16 %v229, %v309
        %v318 = vmul.bf16 %v230, %v313
        %v319 = vmul.bf16 %v231, %v311
        %v320 = vld [vmem:[#allocation2 + $0x18] sm:$0xff]
        %321 = vrot.lane.b32.xlu0 %v286, 1
        %v322 = vpop.permute.xlu0 %321
        %323 = vrot.lane.b32.xlu0 %v293, 1
        %v324 = vpop.permute.xlu0 %323
        %vm325 = vcmask 7168
        %v326 = vsel %vm325, %v322, %v324
        %v330 = vmul.bf16 %v230, %v322
        %v331 = vmul.bf16 %v231, %v326
        %v332 = vmul.bf16 %v320, %v324
        %333 = vrot.lane.b32.xlu0 %v248, 15
        %v334 = vpop.permute.xlu0 %333
        %335 = vrot.lane.b32.xlu0 %v255, 15
        %v336 = vpop.permute.xlu0 %335
        %vm337 = vcmask 121856
        %v338 = vsel %vm337, %v334, %v336
        %v342 = vmul.bf16 %v230, %v334
        %v343 = vmul.bf16 %v231, %v338
        %v344 = vmul.bf16 %v320, %v336
        %345 = vrot.lane.b32.xlu0 %v286, 17
        %v346 = vpop.permute.xlu0 %345
        %347 = vrot.lane.b32.xlu0 %v293, 17
        %v348 = vpop.permute.xlu0 %347
        %vm349 = vcmask 138240
        %v350 = vsel %vm349, %v346, %v348
        %v354 = vmul.bf16 %v230, %v346
        %v355 = vmul.bf16 %v231, %v350
        %v356 = vmul.bf16 %v320, %v348
        %360 = vrot.lane.b32.xlu0 %v229, 127
        %v361 = vpop.permute.xlu0 %360
        %362 = vrot.lane.b32.xlu0 %v230, 127
        %v363 = vpop.permute.xlu0 %362
        %364 = vrot.lane.b32.xlu0 %v231, 127
        %v365 = vpop.permute.xlu0 %364
        %v366 = vsel %vm312, %v361, %v363
        %v367 = vsel %vm312, %v363, %v365
        %371 = vrot.lane.b32.xlu0 %v305, 126
        %v372 = vpop.permute.xlu0 %371
        %373 = vrot.lane.b32.xlu0 %v306, 126
        %v374 = vpop.permute.xlu0 %373
        %375 = vrot.lane.b32.xlu0 %v307, 126
        %v376 = vpop.permute.xlu0 %375
        %vm377 = vcmask 1031168
        %v378 = vsel %vm377, %v372, %v374
        %v379 = vsel %vm377, %v374, %v376
        %383 = vrot.lane.b32.xlu0 %v317, 112
        %v384 = vpop.permute.xlu0 %383
        %385 = vrot.lane.b32.xlu0 %v318, 112
        %v386 = vpop.permute.xlu0 %385
        %387 = vrot.lane.b32.xlu0 %v319, 112
        %v388 = vpop.permute.xlu0 %387
        %vm389 = vcmask 916480
        %v390 = vsel %vm389, %v384, %v386
        %v391 = vsel %vm389, %v386, %v388
        %392 = vrot.lane.b32.xlu0 %v230, 111
        %v393 = vpop.permute.xlu0 %392
        %394 = vrot.lane.b32.xlu0 %v231, 111
        %v395 = vpop.permute.xlu0 %394
        %v396 = vsel %vm262, %v393, %v395
        %400 = vrot.lane.b32.xlu0 %v330, 110
        %v401 = vpop.permute.xlu0 %400
        %402 = vrot.lane.b32.xlu0 %v331, 110
        %v403 = vpop.permute.xlu0 %402
        %404 = vrot.lane.b32.xlu0 %v332, 110
        %v405 = vpop.permute.xlu0 %404
        %vm406 = vcmask 900096
        %v407 = vsel %vm406, %v401, %v403
        %v408 = vsel %vm406, %v403, %v405
        %412 = vrot.lane.b32.xlu0 %v342, 96
        %v413 = vpop.permute.xlu0 %412
        %414 = vrot.lane.b32.xlu0 %v343, 96
        %v415 = vpop.permute.xlu0 %414
        %416 = vrot.lane.b32.xlu0 %v344, 96
        %v417 = vpop.permute.xlu0 %416
        %vm418 = vcmask 785408
        %v419 = vsel %vm418, %v413, %v415
        %v420 = vsel %vm418, %v415, %v417
        %422 = vrot.lane.b32.xlu0 %v230, 95
        %v423 = vpop.permute.xlu0 %422
        %424 = vrot.lane.b32.xlu0 %v231, 95
        %v425 = vpop.permute.xlu0 %424
        %426 = vrot.lane.b32.xlu0 %v320, 95
        %v427 = vpop.permute.xlu0 %426
        %vm428 = vcmask 777216
        %v429 = vsel %vm428, %v423, %v425
        %v430 = vsel %vm428, %v425, %v427
        %434 = vrot.lane.b32.xlu0 %v354, 94
        %v435 = vpop.permute.xlu0 %434
        %436 = vrot.lane.b32.xlu0 %v355, 94
        %v437 = vpop.permute.xlu0 %436
        %438 = vrot.lane.b32.xlu0 %v356, 94
        %v439 = vpop.permute.xlu0 %438
        %vm440 = vcmask 769024
        %v441 = vsel %vm440, %v435, %v437
        %v442 = vsel %vm440, %v437, %v439
        %v443 = vld [vmem:[#allocation3] sm:$0xff]
        %v444 = vld [vmem:[%s2] sm:$0xff]
        %446 = vset.pattern.permute.xlu0 0
        %447 = vperm.xlu0 %446, %v444
        %v448 = vpop.permute.xlu0 %447
        %v451 = vunpack.c.l.b16 %v443
        %v452 = vunpack.c.h.b16 %v443
        %v453 = vpack.c.b16 %v451, %v451
        %v454 = vpack.c.b16 %v452, %v452
        %459 = vrot.lane.b32.xlu0 %v267, 17
        %v460 = vpop.permute.xlu0 %459
        %461 = vrot.lane.b32.xlu0 %v268, 17
        %v462 = vpop.permute.xlu0 %461
        %463 = vrot.lane.b32.xlu0 %v269, 17
        %v464 = vpop.permute.xlu0 %463
        %465 = vrot.lane.b32.xlu0 %v366, 17
        %v466 = vpop.permute.xlu0 %465
        %467 = vrot.lane.b32.xlu0 %v367, 17
        %v468 = vpop.permute.xlu0 %467
        %469 = vrot.lane.b32.xlu0 %v365, 17
        %v470 = vpop.permute.xlu0 %469
        %471 = vrot.lane.b32.xlu0 %v378, 17
        %v472 = vpop.permute.xlu0 %471
        %473 = vrot.lane.b32.xlu0 %v379, 17
        %v474 = vpop.permute.xlu0 %473
        %475 = vrot.lane.b32.xlu0 %v376, 17
        %v476 = vpop.permute.xlu0 %475
        %477 = vrot.lane.b32.xlu0 %v390, 17
        %v478 = vpop.permute.xlu0 %477
        %479 = vrot.lane.b32.xlu0 %v391, 17
        %v480 = vpop.permute.xlu0 %479
        %481 = vrot.lane.b32.xlu0 %v388, 17
        %v482 = vpop.permute.xlu0 %481
        %483 = vrot.lane.b32.xlu0 %v393, 17
        %v484 = vpop.permute.xlu0 %483
        %485 = vrot.lane.b32.xlu0 %v396, 17
        %v486 = vpop.permute.xlu0 %485
        %487 = vrot.lane.b32.xlu0 %v395, 17
        %v488 = vpop.permute.xlu0 %487
        %489 = vrot.lane.b32.xlu0 %v401, 17
        %v490 = vpop.permute.xlu0 %489
        %491 = vrot.lane.b32.xlu0 %v407, 17
        %v492 = vpop.permute.xlu0 %491
        %493 = vrot.lane.b32.xlu0 %v408, 17
        %v494 = vpop.permute.xlu0 %493
        %495 = vrot.lane.b32.xlu0 %v413, 17
        %v496 = vpop.permute.xlu0 %495
        %497 = vrot.lane.b32.xlu0 %v419, 17
        %v498 = vpop.permute.xlu0 %497
        %499 = vrot.lane.b32.xlu0 %v420, 17
        %v500 = vpop.permute.xlu0 %499
        %501 = vrot.lane.b32.xlu0 %v423, 17
        %v502 = vpop.permute.xlu0 %501
        %503 = vrot.lane.b32.xlu0 %v429, 17
        %v504 = vpop.permute.xlu0 %503
        %505 = vrot.lane.b32.xlu0 %v430, 17
        %v506 = vpop.permute.xlu0 %505
        %507 = vrot.lane.b32.xlu0 %v435, 17
        %v508 = vpop.permute.xlu0 %507
        %509 = vrot.lane.b32.xlu0 %v441, 17
        %v510 = vpop.permute.xlu0 %509
        %511 = vrot.lane.b32.xlu0 %v442, 17
        %v512 = vpop.permute.xlu0 %511
        %v513 = vsel %vm349, %v460, %v462
        %v514 = vsel %vm349, %v462, %v464
        %v515 = vsel %vm349, %v466, %v468
        %v516 = vsel %vm349, %v468, %v470
        %v517 = vsel %vm349, %v472, %v474
        %v518 = vsel %vm349, %v474, %v476
        %v519 = vsel %vm349, %v478, %v480
        %v520 = vsel %vm349, %v480, %v482
        %v521 = vsel %vm349, %v484, %v486
        %v522 = vsel %vm349, %v486, %v488
        %v523 = vsel %vm349, %v490, %v492
        %v524 = vsel %vm349, %v492, %v494
        %v525 = vsel %vm349, %v496, %v498
        %v526 = vsel %vm349, %v498, %v500
        %v527 = vsel %vm349, %v502, %v504
        %v528 = vsel %vm349, %v504, %v506
        %v529 = vsel %vm349, %v508, %v510
        %v530 = vsel %vm349, %v510, %v512
        %vm549 = vcmask 130048
        %v551 = vsel %vm549, %v454, 0
        %553 = vmatprep.subr.bf16.mxu0 %v514
        %554 = vmatpush1.bf16.msra.mxu0 %v513
        %555 = vmatprep.subr.bf16.mxu0 %v516
        %556 = vmatpush1.bf16.msra.mxu0 %v515
        %557 = vmatprep.subr.bf16.mxu0 %v518
        %558 = vmatpush1.bf16.msra.mxu0 %v517
        %559 = vmatprep.subr.bf16.mxu0 %v520
        %560 = vmatpush1.bf16.msra.mxu0 %v519
        %561 = vmatprep.subr.bf16.mxu0 %v522
        %562 = vmatpush1.bf16.msra.mxu0 %v521
        %563 = vmatprep.subr.bf16.mxu0 %v524
        %564 = vmatpush1.bf16.msra.mxu0 %v523
        %565 = vmatprep.subr.bf16.mxu0 %v526
        %566 = vmatpush1.bf16.msra.mxu0 %v525
        %567 = vmatprep.subr.bf16.mxu0 %v528
        %568 = vmatpush1.bf16.msra.mxu0 %v527
        %569 = vmatprep.subr.bf16.mxu0 %v530
        %570 = vmatpush1.bf16.msra.mxu0 %v529
        %571 = vmatprep.subr.bf16.mxu0 0
        %572 = vmatpush1.bf16.msra.mxu0 0
        %573 = vmatprep.subr.bf16.mxu0 0
        %574 = vmatpush1.bf16.msra.mxu0 0
        %575 = vmatprep.subr.bf16.mxu0 0
        %576 = vmatpush1.bf16.msra.mxu0 0
        %577 = vmatprep.subr.bf16.mxu0 0
        %578 = vmatpush1.bf16.msra.mxu0 0
        %579 = vmatprep.subr.bf16.mxu0 0
        %580 = vmatpush1.bf16.msra.mxu0 0
        %581 = vmatprep.subr.bf16.mxu0 0
        %582 = vmatpush1.bf16.msra.mxu0 0
        %583 = vmatprep.subr.bf16.mxu0 0
        %584 = vmatpush1.bf16.msra.mxu0 0
        %585 = vmatprep.mubr.bf16.mxu0 %v551
        %586 = vmatmul.mubr.bf16.gmra.mrb[0].mxu0 %v453
        %v587 = vpop.f32.mrb[0].mxu0
        %v588 = vadd.f32 %v448, %v587
        %v589 = vpop.f32.mrb[0].mxu0
        %v590 = vadd.f32 %v448, %v589
        %v591 = vpop.f32.mrb[0].mxu0
        %v592 = vpop.f32.mrb[0].mxu0
        %593 = vdwg.mxu0
        %594 = vst [vmem:[%s203] sm:$0xff] %v588
        %595 = vst [vmem:[%s203 + $0x8] sm:$0xff] %v590
        %s596 = sand.u32 %s116, 1
        %s597 = scalar_lea.sflag [#allocation5], %s596
        %s598 = sand.u32 %s116, 1
        %s599 = smul.addr %s598, 16
        %s600 = scalar_lea.vmem [#allocation6], %s599
        // Predicated region
        $region41: #{tpu_custom_call.1} parent=35 // pred_check
          %p601 = pneg %p126
        $region42: #{tpu_custom_call.1} parent=35 // pred_check_branch
          %603 = sbr.rel (%p601) target = $region44
        $region43: #{tpu_custom_call.1} parent=35 // pred_region
          %s605 = ssub.s32 256, 256
          %606 = vsyncadd %s597, %s605
          %s607 = smul.addr %s19, 2
          %s608 = smul.addr %s607, 128
          %s609 = scalar_lea.hbm %s4, %s608
          %s611 = sshll.u32 %s600, 4
          %s612 = int_to_ptr.vmem [resolvable:$true] %s611
          %614 = dma.vmem_to_hbm [thread:$0]  %s612, 256, %s609, %s597
        $region44: #{tpu_custom_call.1} parent=35 // pred_fallthru
          _
      $region36: #{tpu_custom_call.1} parent=5 // pred_fallthru
        _
      %p615 = scmp.le.s32.totalorder 2, %s14
      // Predicated region
      $region45: #{tpu_custom_call.1} parent=5 // pred_check
        %p616 = pneg %p615
      $region46: #{tpu_custom_call.1} parent=5 // pred_check_branch
        %618 = sbr.rel (%p616) target = $region48
      $region47: #{tpu_custom_call.1} parent=5 // pred_region
        %s619 = ssub.s32 %s14, 2
        // Predicated region
        $region49: #{tpu_custom_call.1} parent=47 // pred_check
          %p620 = pneg %p132
        $region50: #{tpu_custom_call.1} parent=47 // pred_check_branch
          %622 = sbr.rel (%p620) target = $region52
        $region51: #{tpu_custom_call.1} parent=47 // pred_region
          %s623 = sand.u32 %s117, 1
          %s624 = scalar_lea.sflag [#allocation5], %s623
          %s625 = sand.u32 %s117, 1
          %s626 = smul.addr %s625, 16
          %s627 = scalar_lea.vmem [#allocation6], %s626
          %628 = dma.done %s624, 256
        $region52: #{tpu_custom_call.1} parent=47 // pred_fallthru
          _
      $region48: #{tpu_custom_call.1} parent=5 // pred_fallthru
        _
    $region6: #{tpu_custom_call.1} parent=1 // loop_footer
      %s18 = sadd.s32 1, %s14
    $region7: #{tpu_custom_call.1} parent=1 // loop_footer_branch
      %13 = sbr.rel target = $region3
    $region8: #{tpu_custom_call.1} parent=1 // loop_exit
      _
    %629 = vsyncpa [#allocation4], 1
    %s630 = scalar_lea.sflag [#allocation4], 1
    %631 = vsyncpa %s630, 1
    %632 = vsyncpa [#allocation5], 1
    %s633 = scalar_lea.sflag [#allocation5], 1
    %634 = vsyncpa %s633, 1

</llo_original>
